<compile_context>
chip_gen: v7x
topology: tpu7x:2x2x1
jax: 0.10.0
libtpu: 0.0.40
codegen_flags: <defaults>
</compile_context>

<pallas_src>
import functools

import jax
import jax.numpy as jnp
from jax.experimental import pallas as pl
from jax.experimental.pallas import tpu as pltpu


def lstm_classifier_kernel(x_ref, wih_ref, whh_ref, b_ref, wfc_ref, bfc_ref,
                           out_ref, gx_ref, *, seq_len, batch, hidden_size):
    """Whole LSTM recurrence + FC head in one grid step (all tiles in VMEM)."""
    S, B, H = seq_len, batch, hidden_size

    # ---- One big fp32 input projection for all time steps: (S*B, I) @ (I, 4H),
    # staged in VMEM scratch so the unrolled recurrence reloads per step.
    gx_ref[...] = (jnp.dot(x_ref[...], wih_ref[...],
                           preferred_element_type=jnp.float32)
                   + b_ref[...])                                   # (S*B, 4H) fp32

    # ---- Serial recurrence: one (B,H)@(H,4H) bf16 MXU push per step,
    # static unroll (S is small), fp32 state.
    h = jnp.zeros((B, H), jnp.float32)
    c = jnp.zeros((B, H), jnp.float32)
    whh = whh_ref[...]                                # (H, 4H) bf16, order [i,f,o,g]
    for t in range(S):
        g_x = gx_ref[t * B:(t + 1) * B, :]            # static, sublane-aligned load
        gates = g_x + jnp.dot(h.astype(jnp.bfloat16), whh,
                              preferred_element_type=jnp.float32)  # (B, 4H) fp32
        # Permuted gate order [i, f, o, g]: one contiguous sigmoid, one tanh.
        s_g = jax.nn.sigmoid(gates[:, :3 * H])        # (B, 3H)  = i | f | o
        g_g = jnp.tanh(gates[:, 3 * H:])              # (B, H)
        c = s_g[:, H:2 * H] * c + s_g[:, :H] * g_g
        h = s_g[:, 2 * H:3 * H] * jnp.tanh(c)

    # ---- Final classifier on the last hidden state (lane-dense padded out).
    logits = (jnp.dot(h.astype(jnp.bfloat16), wfc_ref[...],
                      preferred_element_type=jnp.float32)
              + bfc_ref[...])                                      # (B, C_pad)
    out_ref[...] = logits.astype(out_ref.dtype)


def prepare_params(params, *, hidden_size, classes):
    """One-time weight prep (do this at parameter-load time, not per call).

    Permutes PyTorch gate order [i, f, g, o] -> [i, f, o, g], transposes to
    (K, N) layout, fuses the two biases, casts MXU-only operands to bf16 and
    zero-pads the FC head to a lane-dense 128-wide output block.
    """
    H, C = hidden_size, classes
    C_pad = max(128, ((C + 127) // 128) * 128)

    def permute_gates(w):  # split along the 4H axis 0 and reorder to [i,f,o,g]
        i, f, g, o = jnp.split(w, 4, axis=0)
        return jnp.concatenate([i, f, o, g], axis=0)

    w_ih = permute_gates(params["w_ih"])                           # (4H, I)
    w_hh = permute_gates(params["w_hh"])                           # (4H, H)
    b_all = permute_gates(params["b_ih"] + params["b_hh"])         # (4H,)

    return {
        "wih_t": w_ih.T.astype(jnp.float32),                       # (I, 4H) fp32
        "whh_t": w_hh.T.astype(jnp.bfloat16),                      # (H, 4H) bf16
        "b_all": b_all.reshape(1, 4 * H).astype(jnp.float32),      # (1, 4H)
        "wfc_t": jnp.zeros((H, C_pad), jnp.bfloat16).at[:, :C].set(
            params["w_fc"].T.astype(jnp.bfloat16)),                # (H, C_pad)
        "bfc": jnp.zeros((1, C_pad), jnp.float32).at[:, :C].set(
            params["b_fc"].reshape(1, C)),                         # (1, C_pad)
    }


def lstm_classifier_forward(x, prep, *, hidden_size, classes):
    """x: (S, B, I) float32 (PyTorch nn.LSTM seq-first). Returns (B, classes)."""
    S, B, I = x.shape
    H = hidden_size
    C = classes
    C_pad = prep["wfc_t"].shape[1]

    # Collapse time into rows so the kernel does one big input matmul.
    x2d = x.reshape(S * B, I)

    kernel = functools.partial(lstm_classifier_kernel,
                               seq_len=S, batch=B, hidden_size=H)

    out_pad = pl.pallas_call(
        kernel,
        out_shape=jax.ShapeDtypeStruct((B, C_pad), jnp.float32),
        grid_spec=pltpu.PrefetchScalarGridSpec(
            num_scalar_prefetch=0,
            grid=(1,),
            in_specs=[
                pl.BlockSpec((S * B, I), lambda i: (0, 0)),        # x (flattened)
                pl.BlockSpec((I, 4 * H), lambda i: (0, 0)),        # W_ih^T (fp32)
                pl.BlockSpec((H, 4 * H), lambda i: (0, 0)),        # W_hh^T (bf16)
                pl.BlockSpec((1, 4 * H), lambda i: (0, 0)),        # fused bias
                pl.BlockSpec((H, C_pad), lambda i: (0, 0)),        # W_fc^T (padded)
                pl.BlockSpec((1, C_pad), lambda i: (0, 0)),        # b_fc (padded)
            ],
            out_specs=pl.BlockSpec((B, C_pad), lambda i: (0, 0)),
            scratch_shapes=[pltpu.VMEM((S * B, 4 * H), jnp.float32)],
        ),
        compiler_params=pltpu.CompilerParams(
            dimension_semantics=("arbitrary",)),
    )(x2d, prep["wih_t"], prep["whh_t"], prep["b_all"],
      prep["wfc_t"], prep["bfc"])

    return out_pad[:, :C]


def lstm_classifier_reference(x, params):
    """Pure-JAX fp32 reference of the PyTorch forward pass (for validation)."""
    S, B, I = x.shape
    H = params["w_hh"].shape[1]
    w_ih, w_hh = params["w_ih"], params["w_hh"]
    b = params["b_ih"] + params["b_hh"]

    def step(carry, x_t):
        h, c = carry
        gates = x_t @ w_ih.T + h @ w_hh.T + b
        i_g, f_g, g_g, o_g = jnp.split(gates, 4, axis=-1)
        c = jax.nn.sigmoid(f_g) * c + jax.nn.sigmoid(i_g) * jnp.tanh(g_g)
        h = jax.nn.sigmoid(o_g) * jnp.tanh(c)
        return (h, c), None

    h0 = jnp.zeros((B, H), jnp.float32)
    (h_last, _), _ = jax.lax.scan(step, (h0, h0), x)
    return h_last @ params["w_fc"].T + params["b_fc"]


def init_params(key, input_size, hidden_size, classes):
    """Deterministic PyTorch-style uniform(-1/sqrt(H), 1/sqrt(H)) init."""
    H, I, C = hidden_size, input_size, classes
    k = 1.0 / jnp.sqrt(jnp.float32(H))
    keys = jax.random.split(key, 6)
    u = lambda kk, shp: jax.random.uniform(kk, shp, jnp.float32, -k, k)
    return {
        "w_ih": u(keys[0], (4 * H, I)),
        "w_hh": u(keys[1], (4 * H, H)),
        "b_ih": u(keys[2], (4 * H,)),
        "b_hh": u(keys[3], (4 * H,)),
        "w_fc": u(keys[4], (C, H)),
        "b_fc": u(keys[5], (C,)),
    }


if __name__ == "__main__":
    SEQ, BATCH, INPUT, HIDDEN, CLASSES = 8, 8, 28, 128, 10

    key = jax.random.PRNGKey(0)
    kx, kp = jax.random.split(key)
    x = jax.random.normal(kx, (SEQ, BATCH, INPUT), jnp.float32)
    params = init_params(kp, INPUT, HIDDEN, CLASSES)

    # One-time weight preparation (hoisted out of the per-call forward path).
    prep = prepare_params(params, hidden_size=HIDDEN, classes=CLASSES)
    prep = jax.tree_util.tree_map(jax.block_until_ready, prep)

    forward = jax.jit(functools.partial(lstm_classifier_forward,
                                        hidden_size=HIDDEN, classes=CLASSES))
    logits = jax.block_until_ready(forward(x, prep))

    ref = lstm_classifier_reference(x, params)
    assert logits.shape == (BATCH, CLASSES)
    # bf16 MXU operands in the recurrence / FC (fp32 accumulation) vs fp32
    # reference -> loose tolerance.
    assert jnp.allclose(logits, ref, atol=3e-2, rtol=3e-2), (
        f"max abs err {jnp.max(jnp.abs(logits - ref))}")

    print("KERNEL_OK")
</pallas_src>

<mosaic_0001>
module attributes {stable_mosaic.version = 11 : i64} {
  func.func @lstm_classifier_kernel(%arg0: i32, %arg1: memref<64x28xf32, #tpu.memory_space<vmem>>, %arg2: memref<28x512xf32, #tpu.memory_space<vmem>>, %arg3: memref<128x512xbf16, #tpu.memory_space<vmem>>, %arg4: memref<1x512xf32, #tpu.memory_space<vmem>>, %arg5: memref<128x128xbf16, #tpu.memory_space<vmem>>, %arg6: memref<1x128xf32, #tpu.memory_space<vmem>>, %arg7: memref<8x128xf32, #tpu.memory_space<vmem>>, %arg8: memref<64x512xf32, #tpu.memory_space<vmem>>) attributes {dimension_semantics = [#tpu.dimension_semantics<arbitrary>], iteration_bounds = array<i64: 1>, scalar_prefetch = 0 : i64, scratch_operands = 1 : i64, tpu.core_type = #tpu.core_type<tc>, window_params = [{pipeline_mode = #tpu.pipeline_mode<synchronous>, transform_indices = @transform_0, window_bounds = array<i64: 64, 28>}, {pipeline_mode = #tpu.pipeline_mode<synchronous>, transform_indices = @transform_1, window_bounds = array<i64: 28, 512>}, {pipeline_mode = #tpu.pipeline_mode<synchronous>, transform_indices = @transform_2, window_bounds = array<i64: 128, 512>}, {pipeline_mode = #tpu.pipeline_mode<synchronous>, transform_indices = @transform_3, window_bounds = array<i64: 1, 512>}, {pipeline_mode = #tpu.pipeline_mode<synchronous>, transform_indices = @transform_4, window_bounds = array<i64: 128, 128>}, {pipeline_mode = #tpu.pipeline_mode<synchronous>, transform_indices = @transform_5, window_bounds = array<i64: 1, 128>}, {pipeline_mode = #tpu.pipeline_mode<synchronous>, transform_indices = @transform_6, window_bounds = array<i64: 8, 128>}]} {
    %c0 = arith.constant 0 : index
    %c0_0 = arith.constant 0 : index
    %0 = vector.load %arg1[%c0, %c0_0] : memref<64x28xf32, #tpu.memory_space<vmem>>, vector<64x28xf32>
    %c0_1 = arith.constant 0 : index
    %c0_2 = arith.constant 0 : index
    %1 = vector.load %arg2[%c0_1, %c0_2] : memref<28x512xf32, #tpu.memory_space<vmem>>, vector<28x512xf32>
    %cst = arith.constant dense<0.000000e+00> : vector<64x512xf32>
    %2 = tpu.matmul %0, %1, %cst {dimension_numbers = #tpu.dot_dimension_numbers<[1], [0], [0], [1], [0, 0, 1, 1], [], []>} : vector<64x28xf32>, vector<28x512xf32>, vector<64x512xf32> -> vector<64x512xf32>
    %c0_3 = arith.constant 0 : index
    %c0_4 = arith.constant 0 : index
    %3 = vector.load %arg4[%c0_3, %c0_4] : memref<1x512xf32, #tpu.memory_space<vmem>>, vector<1x512xf32>
    %4 = vector.broadcast %3 : vector<1x512xf32> to vector<64x512xf32>
    %5 = arith.addf %2, %4 : vector<64x512xf32>
    %c0_5 = arith.constant 0 : index
    %c0_6 = arith.constant 0 : index
    %6 = vector.load %arg8[%c0_5, %c0_6] : memref<64x512xf32, #tpu.memory_space<vmem>>, vector<64x512xf32>
    tpu.vector_store %arg8[%c0_5, %c0_6], %5 {strides = array<i32>} : memref<64x512xf32, #tpu.memory_space<vmem>>, vector<64x512xf32>,
    %cst_7 = arith.constant 0.000000e+00 : f32
    %7 = vector.broadcast %cst_7 : f32 to vector<8x128xf32>
    %cst_8 = arith.constant 0.000000e+00 : f32
    %8 = vector.broadcast %cst_8 : f32 to vector<8x128xf32>
    %c0_9 = arith.constant 0 : index
    %c0_10 = arith.constant 0 : index
    %9 = vector.load %arg3[%c0_9, %c0_10] : memref<128x512xbf16, #tpu.memory_space<vmem>>, vector<128x512xbf16>
    %c0_11 = arith.constant 0 : index
    %c0_12 = arith.constant 0 : index
    %10 = vector.load %arg8[%c0_11, %c0_12] : memref<64x512xf32, #tpu.memory_space<vmem>>, vector<8x512xf32>
    %11 = arith.truncf %7 : vector<8x128xf32> to vector<8x128xbf16>
    %cst_13 = arith.constant dense<0.000000e+00> : vector<8x512xf32>
    %12 = tpu.matmul %11, %9, %cst_13 {dimension_numbers = #tpu.dot_dimension_numbers<[1], [0], [0], [1], [0, 0, 1, 1], [], []>} : vector<8x128xbf16>, vector<128x512xbf16>, vector<8x512xf32> -> vector<8x512xf32>
    %13 = arith.addf %10, %12 : vector<8x512xf32>
    %14 = vector.extract_strided_slice %13 {offsets = [0, 0], sizes = [8, 384], strides = [1, 1]} : vector<8x512xf32> to vector<8x384xf32>
    %15 = arith.negf %14 : vector<8x384xf32>
    %16 = math.exp %15 : vector<8x384xf32>
    %cst_14 = arith.constant 1.000000e+00 : f32
    %17 = vector.broadcast %cst_14 : f32 to vector<8x384xf32>
    %18 = arith.addf %17, %16 : vector<8x384xf32>
    %19 = arith.divf %17, %18 : vector<8x384xf32>
    %20 = vector.extract_strided_slice %13 {offsets = [0, 384], sizes = [8, 128], strides = [1, 1]} : vector<8x512xf32> to vector<8x128xf32>
    %21 = math.tanh %20 : vector<8x128xf32>
    %22 = vector.extract_strided_slice %19 {offsets = [0, 128], sizes = [8, 128], strides = [1, 1]} : vector<8x384xf32> to vector<8x128xf32>
    %23 = arith.mulf %22, %8 : vector<8x128xf32>
    %24 = vector.extract_strided_slice %19 {offsets = [0, 0], sizes = [8, 128], strides = [1, 1]} : vector<8x384xf32> to vector<8x128xf32>
    %25 = arith.mulf %24, %21 : vector<8x128xf32>
    %26 = arith.addf %23, %25 : vector<8x128xf32>
    %27 = vector.extract_strided_slice %19 {offsets = [0, 256], sizes = [8, 128], strides = [1, 1]} : vector<8x384xf32> to vector<8x128xf32>
    %28 = math.tanh %26 : vector<8x128xf32>
    %29 = arith.mulf %27, %28 : vector<8x128xf32>
    %c8 = arith.constant 8 : index
    %c0_15 = arith.constant 0 : index
    %30 = vector.load %arg8[%c8, %c0_15] : memref<64x512xf32, #tpu.memory_space<vmem>>, vector<8x512xf32>
    %31 = arith.truncf %29 : vector<8x128xf32> to vector<8x128xbf16>
    %cst_16 = arith.constant dense<0.000000e+00> : vector<8x512xf32>
    %32 = tpu.matmul %31, %9, %cst_16 {dimension_numbers = #tpu.dot_dimension_numbers<[1], [0], [0], [1], [0, 0, 1, 1], [], []>} : vector<8x128xbf16>, vector<128x512xbf16>, vector<8x512xf32> -> vector<8x512xf32>
    %33 = arith.addf %30, %32 : vector<8x512xf32>
    %34 = vector.extract_strided_slice %33 {offsets = [0, 0], sizes = [8, 384], strides = [1, 1]} : vector<8x512xf32> to vector<8x384xf32>
    %35 = arith.negf %34 : vector<8x384xf32>
    %36 = math.exp %35 : vector<8x384xf32>
    %cst_17 = arith.constant 1.000000e+00 : f32
    %37 = vector.broadcast %cst_17 : f32 to vector<8x384xf32>
    %38 = arith.addf %37, %36 : vector<8x384xf32>
    %39 = arith.divf %37, %38 : vector<8x384xf32>
    %40 = vector.extract_strided_slice %33 {offsets = [0, 384], sizes = [8, 128], strides = [1, 1]} : vector<8x512xf32> to vector<8x128xf32>
    %41 = math.tanh %40 : vector<8x128xf32>
    %42 = vector.extract_strided_slice %39 {offsets = [0, 128], sizes = [8, 128], strides = [1, 1]} : vector<8x384xf32> to vector<8x128xf32>
    %43 = arith.mulf %42, %26 : vector<8x128xf32>
    %44 = vector.extract_strided_slice %39 {offsets = [0, 0], sizes = [8, 128], strides = [1, 1]} : vector<8x384xf32> to vector<8x128xf32>
    %45 = arith.mulf %44, %41 : vector<8x128xf32>
    %46 = arith.addf %43, %45 : vector<8x128xf32>
    %47 = vector.extract_strided_slice %39 {offsets = [0, 256], sizes = [8, 128], strides = [1, 1]} : vector<8x384xf32> to vector<8x128xf32>
    %48 = math.tanh %46 : vector<8x128xf32>
    %49 = arith.mulf %47, %48 : vector<8x128xf32>
    %c16 = arith.constant 16 : index
    %c0_18 = arith.constant 0 : index
    %50 = vector.load %arg8[%c16, %c0_18] : memref<64x512xf32, #tpu.memory_space<vmem>>, vector<8x512xf32>
    %51 = arith.truncf %49 : vector<8x128xf32> to vector<8x128xbf16>
    %cst_19 = arith.constant dense<0.000000e+00> : vector<8x512xf32>
    %52 = tpu.matmul %51, %9, %cst_19 {dimension_numbers = #tpu.dot_dimension_numbers<[1], [0], [0], [1], [0, 0, 1, 1], [], []>} : vector<8x128xbf16>, vector<128x512xbf16>, vector<8x512xf32> -> vector<8x512xf32>
    %53 = arith.addf %50, %52 : vector<8x512xf32>
    %54 = vector.extract_strided_slice %53 {offsets = [0, 0], sizes = [8, 384], strides = [1, 1]} : vector<8x512xf32> to vector<8x384xf32>
    %55 = arith.negf %54 : vector<8x384xf32>
    %56 = math.exp %55 : vector<8x384xf32>
    %cst_20 = arith.constant 1.000000e+00 : f32
    %57 = vector.broadcast %cst_20 : f32 to vector<8x384xf32>
    %58 = arith.addf %57, %56 : vector<8x384xf32>
    %59 = arith.divf %57, %58 : vector<8x384xf32>
    %60 = vector.extract_strided_slice %53 {offsets = [0, 384], sizes = [8, 128], strides = [1, 1]} : vector<8x512xf32> to vector<8x128xf32>
    %61 = math.tanh %60 : vector<8x128xf32>
    %62 = vector.extract_strided_slice %59 {offsets = [0, 128], sizes = [8, 128], strides = [1, 1]} : vector<8x384xf32> to vector<8x128xf32>
    %63 = arith.mulf %62, %46 : vector<8x128xf32>
    %64 = vector.extract_strided_slice %59 {offsets = [0, 0], sizes = [8, 128], strides = [1, 1]} : vector<8x384xf32> to vector<8x128xf32>
    %65 = arith.mulf %64, %61 : vector<8x128xf32>
    %66 = arith.addf %63, %65 : vector<8x128xf32>
    %67 = vector.extract_strided_slice %59 {offsets = [0, 256], sizes = [8, 128], strides = [1, 1]} : vector<8x384xf32> to vector<8x128xf32>
    %68 = math.tanh %66 : vector<8x128xf32>
    %69 = arith.mulf %67, %68 : vector<8x128xf32>
    %c24 = arith.constant 24 : index
    %c0_21 = arith.constant 0 : index
    %70 = vector.load %arg8[%c24, %c0_21] : memref<64x512xf32, #tpu.memory_space<vmem>>, vector<8x512xf32>
    %71 = arith.truncf %69 : vector<8x128xf32> to vector<8x128xbf16>
    %cst_22 = arith.constant dense<0.000000e+00> : vector<8x512xf32>
    %72 = tpu.matmul %71, %9, %cst_22 {dimension_numbers = #tpu.dot_dimension_numbers<[1], [0], [0], [1], [0, 0, 1, 1], [], []>} : vector<8x128xbf16>, vector<128x512xbf16>, vector<8x512xf32> -> vector<8x512xf32>
    %73 = arith.addf %70, %72 : vector<8x512xf32>
    %74 = vector.extract_strided_slice %73 {offsets = [0, 0], sizes = [8, 384], strides = [1, 1]} : vector<8x512xf32> to vector<8x384xf32>
    %75 = arith.negf %74 : vector<8x384xf32>
    %76 = math.exp %75 : vector<8x384xf32>
    %cst_23 = arith.constant 1.000000e+00 : f32
    %77 = vector.broadcast %cst_23 : f32 to vector<8x384xf32>
    %78 = arith.addf %77, %76 : vector<8x384xf32>
    %79 = arith.divf %77, %78 : vector<8x384xf32>
    %80 = vector.extract_strided_slice %73 {offsets = [0, 384], sizes = [8, 128], strides = [1, 1]} : vector<8x512xf32> to vector<8x128xf32>
    %81 = math.tanh %80 : vector<8x128xf32>
    %82 = vector.extract_strided_slice %79 {offsets = [0, 128], sizes = [8, 128], strides = [1, 1]} : vector<8x384xf32> to vector<8x128xf32>
    %83 = arith.mulf %82, %66 : vector<8x128xf32>
    %84 = vector.extract_strided_slice %79 {offsets = [0, 0], sizes = [8, 128], strides = [1, 1]} : vector<8x384xf32> to vector<8x128xf32>
    %85 = arith.mulf %84, %81 : vector<8x128xf32>
    %86 = arith.addf %83, %85 : vector<8x128xf32>
    %87 = vector.extract_strided_slice %79 {offsets = [0, 256], sizes = [8, 128], strides = [1, 1]} : vector<8x384xf32> to vector<8x128xf32>
    %88 = math.tanh %86 : vector<8x128xf32>
    %89 = arith.mulf %87, %88 : vector<8x128xf32>
    %c32 = arith.constant 32 : index
    %c0_24 = arith.constant 0 : index
    %90 = vector.load %arg8[%c32, %c0_24] : memref<64x512xf32, #tpu.memory_space<vmem>>, vector<8x512xf32>
    %91 = arith.truncf %89 : vector<8x128xf32> to vector<8x128xbf16>
    %cst_25 = arith.constant dense<0.000000e+00> : vector<8x512xf32>
    %92 = tpu.matmul %91, %9, %cst_25 {dimension_numbers = #tpu.dot_dimension_numbers<[1], [0], [0], [1], [0, 0, 1, 1], [], []>} : vector<8x128xbf16>, vector<128x512xbf16>, vector<8x512xf32> -> vector<8x512xf32>
    %93 = arith.addf %90, %92 : vector<8x512xf32>
    %94 = vector.extract_strided_slice %93 {offsets = [0, 0], sizes = [8, 384], strides = [1, 1]} : vector<8x512xf32> to vector<8x384xf32>
    %95 = arith.negf %94 : vector<8x384xf32>
    %96 = math.exp %95 : vector<8x384xf32>
    %cst_26 = arith.constant 1.000000e+00 : f32
    %97 = vector.broadcast %cst_26 : f32 to vector<8x384xf32>
    %98 = arith.addf %97, %96 : vector<8x384xf32>
    %99 = arith.divf %97, %98 : vector<8x384xf32>
    %100 = vector.extract_strided_slice %93 {offsets = [0, 384], sizes = [8, 128], strides = [1, 1]} : vector<8x512xf32> to vector<8x128xf32>
    %101 = math.tanh %100 : vector<8x128xf32>
    %102 = vector.extract_strided_slice %99 {offsets = [0, 128], sizes = [8, 128], strides = [1, 1]} : vector<8x384xf32> to vector<8x128xf32>
    %103 = arith.mulf %102, %86 : vector<8x128xf32>
    %104 = vector.extract_strided_slice %99 {offsets = [0, 0], sizes = [8, 128], strides = [1, 1]} : vector<8x384xf32> to vector<8x128xf32>
    %105 = arith.mulf %104, %101 : vector<8x128xf32>
    %106 = arith.addf %103, %105 : vector<8x128xf32>
    %107 = vector.extract_strided_slice %99 {offsets = [0, 256], sizes = [8, 128], strides = [1, 1]} : vector<8x384xf32> to vector<8x128xf32>
    %108 = math.tanh %106 : vector<8x128xf32>
    %109 = arith.mulf %107, %108 : vector<8x128xf32>
    %c40 = arith.constant 40 : index
    %c0_27 = arith.constant 0 : index
    %110 = vector.load %arg8[%c40, %c0_27] : memref<64x512xf32, #tpu.memory_space<vmem>>, vector<8x512xf32>
    %111 = arith.truncf %109 : vector<8x128xf32> to vector<8x128xbf16>
    %cst_28 = arith.constant dense<0.000000e+00> : vector<8x512xf32>
    %112 = tpu.matmul %111, %9, %cst_28 {dimension_numbers = #tpu.dot_dimension_numbers<[1], [0], [0], [1], [0, 0, 1, 1], [], []>} : vector<8x128xbf16>, vector<128x512xbf16>, vector<8x512xf32> -> vector<8x512xf32>
    %113 = arith.addf %110, %112 : vector<8x512xf32>
    %114 = vector.extract_strided_slice %113 {offsets = [0, 0], sizes = [8, 384], strides = [1, 1]} : vector<8x512xf32> to vector<8x384xf32>
    %115 = arith.negf %114 : vector<8x384xf32>
    %116 = math.exp %115 : vector<8x384xf32>
    %cst_29 = arith.constant 1.000000e+00 : f32
    %117 = vector.broadcast %cst_29 : f32 to vector<8x384xf32>
    %118 = arith.addf %117, %116 : vector<8x384xf32>
    %119 = arith.divf %117, %118 : vector<8x384xf32>
    %120 = vector.extract_strided_slice %113 {offsets = [0, 384], sizes = [8, 128], strides = [1, 1]} : vector<8x512xf32> to vector<8x128xf32>
    %121 = math.tanh %120 : vector<8x128xf32>
    %122 = vector.extract_strided_slice %119 {offsets = [0, 128], sizes = [8, 128], strides = [1, 1]} : vector<8x384xf32> to vector<8x128xf32>
    %123 = arith.mulf %122, %106 : vector<8x128xf32>
    %124 = vector.extract_strided_slice %119 {offsets = [0, 0], sizes = [8, 128], strides = [1, 1]} : vector<8x384xf32> to vector<8x128xf32>
    %125 = arith.mulf %124, %121 : vector<8x128xf32>
    %126 = arith.addf %123, %125 : vector<8x128xf32>
    %127 = vector.extract_strided_slice %119 {offsets = [0, 256], sizes = [8, 128], strides = [1, 1]} : vector<8x384xf32> to vector<8x128xf32>
    %128 = math.tanh %126 : vector<8x128xf32>
    %129 = arith.mulf %127, %128 : vector<8x128xf32>
    %c48 = arith.constant 48 : index
    %c0_30 = arith.constant 0 : index
    %130 = vector.load %arg8[%c48, %c0_30] : memref<64x512xf32, #tpu.memory_space<vmem>>, vector<8x512xf32>
    %131 = arith.truncf %129 : vector<8x128xf32> to vector<8x128xbf16>
    %cst_31 = arith.constant dense<0.000000e+00> : vector<8x512xf32>
    %132 = tpu.matmul %131, %9, %cst_31 {dimension_numbers = #tpu.dot_dimension_numbers<[1], [0], [0], [1], [0, 0, 1, 1], [], []>} : vector<8x128xbf16>, vector<128x512xbf16>, vector<8x512xf32> -> vector<8x512xf32>
    %133 = arith.addf %130, %132 : vector<8x512xf32>
    %134 = vector.extract_strided_slice %133 {offsets = [0, 0], sizes = [8, 384], strides = [1, 1]} : vector<8x512xf32> to vector<8x384xf32>
    %135 = arith.negf %134 : vector<8x384xf32>
    %136 = math.exp %135 : vector<8x384xf32>
    %cst_32 = arith.constant 1.000000e+00 : f32
    %137 = vector.broadcast %cst_32 : f32 to vector<8x384xf32>
    %138 = arith.addf %137, %136 : vector<8x384xf32>
    %139 = arith.divf %137, %138 : vector<8x384xf32>
    %140 = vector.extract_strided_slice %133 {offsets = [0, 384], sizes = [8, 128], strides = [1, 1]} : vector<8x512xf32> to vector<8x128xf32>
    %141 = math.tanh %140 : vector<8x128xf32>
    %142 = vector.extract_strided_slice %139 {offsets = [0, 128], sizes = [8, 128], strides = [1, 1]} : vector<8x384xf32> to vector<8x128xf32>
    %143 = arith.mulf %142, %126 : vector<8x128xf32>
    %144 = vector.extract_strided_slice %139 {offsets = [0, 0], sizes = [8, 128], strides = [1, 1]} : vector<8x384xf32> to vector<8x128xf32>
    %145 = arith.mulf %144, %141 : vector<8x128xf32>
    %146 = arith.addf %143, %145 : vector<8x128xf32>
    %147 = vector.extract_strided_slice %139 {offsets = [0, 256], sizes = [8, 128], strides = [1, 1]} : vector<8x384xf32> to vector<8x128xf32>
    %148 = math.tanh %146 : vector<8x128xf32>
    %149 = arith.mulf %147, %148 : vector<8x128xf32>
    %c56 = arith.constant 56 : index
    %c0_33 = arith.constant 0 : index
    %150 = vector.load %arg8[%c56, %c0_33] : memref<64x512xf32, #tpu.memory_space<vmem>>, vector<8x512xf32>
    %151 = arith.truncf %149 : vector<8x128xf32> to vector<8x128xbf16>
    %cst_34 = arith.constant dense<0.000000e+00> : vector<8x512xf32>
    %152 = tpu.matmul %151, %9, %cst_34 {dimension_numbers = #tpu.dot_dimension_numbers<[1], [0], [0], [1], [0, 0, 1, 1], [], []>} : vector<8x128xbf16>, vector<128x512xbf16>, vector<8x512xf32> -> vector<8x512xf32>
    %153 = arith.addf %150, %152 : vector<8x512xf32>
    %154 = vector.extract_strided_slice %153 {offsets = [0, 0], sizes = [8, 384], strides = [1, 1]} : vector<8x512xf32> to vector<8x384xf32>
    %155 = arith.negf %154 : vector<8x384xf32>
    %156 = math.exp %155 : vector<8x384xf32>
    %cst_35 = arith.constant 1.000000e+00 : f32
    %157 = vector.broadcast %cst_35 : f32 to vector<8x384xf32>
    %158 = arith.addf %157, %156 : vector<8x384xf32>
    %159 = arith.divf %157, %158 : vector<8x384xf32>
    %160 = vector.extract_strided_slice %153 {offsets = [0, 384], sizes = [8, 128], strides = [1, 1]} : vector<8x512xf32> to vector<8x128xf32>
    %161 = math.tanh %160 : vector<8x128xf32>
    %162 = vector.extract_strided_slice %159 {offsets = [0, 128], sizes = [8, 128], strides = [1, 1]} : vector<8x384xf32> to vector<8x128xf32>
    %163 = arith.mulf %162, %146 : vector<8x128xf32>
    %164 = vector.extract_strided_slice %159 {offsets = [0, 0], sizes = [8, 128], strides = [1, 1]} : vector<8x384xf32> to vector<8x128xf32>
    %165 = arith.mulf %164, %161 : vector<8x128xf32>
    %166 = arith.addf %163, %165 : vector<8x128xf32>
    %167 = vector.extract_strided_slice %159 {offsets = [0, 256], sizes = [8, 128], strides = [1, 1]} : vector<8x384xf32> to vector<8x128xf32>
    %168 = math.tanh %166 : vector<8x128xf32>
    %169 = arith.mulf %167, %168 : vector<8x128xf32>
    %170 = arith.truncf %169 : vector<8x128xf32> to vector<8x128xbf16>
    %c0_36 = arith.constant 0 : index
    %c0_37 = arith.constant 0 : index
    %171 = vector.load %arg5[%c0_36, %c0_37] : memref<128x128xbf16, #tpu.memory_space<vmem>>, vector<128x128xbf16>
    %cst_38 = arith.constant dense<0.000000e+00> : vector<8x128xf32>
    %172 = tpu.matmul %170, %171, %cst_38 {dimension_numbers = #tpu.dot_dimension_numbers<[1], [0], [0], [1], [0, 0, 1, 1], [], []>} : vector<8x128xbf16>, vector<128x128xbf16>, vector<8x128xf32> -> vector<8x128xf32>
    %c0_39 = arith.constant 0 : index
    %c0_40 = arith.constant 0 : index
    %173 = vector.load %arg6[%c0_39, %c0_40] : memref<1x128xf32, #tpu.memory_space<vmem>>, vector<1x128xf32>
    %174 = vector.broadcast %173 : vector<1x128xf32> to vector<8x128xf32>
    %175 = arith.addf %172, %174 : vector<8x128xf32>
    %c0_41 = arith.constant 0 : index
    %c0_42 = arith.constant 0 : index
    %176 = vector.load %arg7[%c0_41, %c0_42] : memref<8x128xf32, #tpu.memory_space<vmem>>, vector<8x128xf32>
    tpu.vector_store %arg7[%c0_41, %c0_42], %175 {strides = array<i32>} : memref<8x128xf32, #tpu.memory_space<vmem>>, vector<8x128xf32>,
    return
  }
  func.func @transform_0(%arg0: i32) -> (i32, i32) {
    %c0_i32 = arith.constant 0 : i32
    %c0_i32_0 = arith.constant 0 : i32
    %c0_i32_1 = arith.constant 0 : i32
    return %c0_i32, %c0_i32_0 : i32, i32
  }
  func.func @transform_1(%arg0: i32) -> (i32, i32) {
    %c0_i32 = arith.constant 0 : i32
    %c0_i32_0 = arith.constant 0 : i32
    %c0_i32_1 = arith.constant 0 : i32
    return %c0_i32, %c0_i32_0 : i32, i32
  }
  func.func @transform_2(%arg0: i32) -> (i32, i32) {
    %c0_i32 = arith.constant 0 : i32
    %c0_i32_0 = arith.constant 0 : i32
    %c0_i32_1 = arith.constant 0 : i32
    return %c0_i32, %c0_i32_0 : i32, i32
  }
  func.func @transform_3(%arg0: i32) -> (i32, i32) {
    %c0_i32 = arith.constant 0 : i32
    %c0_i32_0 = arith.constant 0 : i32
    %c0_i32_1 = arith.constant 0 : i32
    return %c0_i32, %c0_i32_0 : i32, i32
  }
  func.func @transform_4(%arg0: i32) -> (i32, i32) {
    %c0_i32 = arith.constant 0 : i32
    %c0_i32_0 = arith.constant 0 : i32
    %c0_i32_1 = arith.constant 0 : i32
    return %c0_i32, %c0_i32_0 : i32, i32
  }
  func.func @transform_5(%arg0: i32) -> (i32, i32) {
    %c0_i32 = arith.constant 0 : i32
    %c0_i32_0 = arith.constant 0 : i32
    %c0_i32_1 = arith.constant 0 : i32
    return %c0_i32, %c0_i32_0 : i32, i32
  }
  func.func @transform_6(%arg0: i32) -> (i32, i32) {
    %c0_i32 = arith.constant 0 : i32
    %c0_i32_0 = arith.constant 0 : i32
    %c0_i32_1 = arith.constant 0 : i32
    return %c0_i32, %c0_i32_0 : i32, i32
  }
}

</mosaic_0001>

<llo_original>
// kernel: lstm_classifier_forward.1
$region0: #{lstm_classifier_forward.1}
  #allocation0 [shape = 'u32[]', space=smem, size = 0x4, offset = 0x4, fixed_abs, tag = 'smem constant byte address 0x4 - core index']
  #allocation1 [shape = 'u32[144,128]{1,0:T(1,128)}', space=vmem, size = 0x12000, scoped, tag = 'internal scratch']
  #allocation2 [shape = 'f32[64,512]{1,0:T(8,128)}', space=vmem, size = 0x20000, scoped, tag = 'scratch operand']
  %s0 = inlined_call_operand.hbm [shape: f32[64,28], index: 0, kind: input, shape index: {}]
  %s1 = inlined_call_operand.hbm [shape: f32[28,512], index: 1, kind: input, shape index: {}]
  %s2 = inlined_call_operand.hbm [shape: bf16[128,512], index: 2, kind: input, shape index: {}]
  %s3 = inlined_call_operand.vmem [shape: f32[1,512], index: 3, kind: input, shape index: {}]
  %s4 = inlined_call_operand.hbm [shape: bf16[128,128], index: 4, kind: input, shape index: {}]
  %s5 = inlined_call_operand.vmem [shape: f32[1,128], index: 5, kind: input, shape index: {}]
  %s6 = inlined_call_operand.hbm [shape: f32[8,128], index: 6, kind: output, shape index: {}]
  %s7 = sld [smem:[#allocation0]]
  $region50: #{lstm_classifier_forward.1} parent=0
    _
  %s9 = ssub.s32 1, %s7
  %s10 = scalar_select 0, %s9, %s7
  $region1: #{lstm_classifier_forward.1} parent=0
    #allocation3 [shape = 'u8[32768]{0}', space=vmem, size = 0x8000, scoped, tag = 'input window, operand 0, single buffered']
    #allocation4 [shape = 's32[1]{0}', space=sflag, size = 0x4, scoped, tag = 'scoped memory for lstm_classifier_forward.1']
    #allocation5 [shape = 's32[1]{0}', space=sflag, size = 0x4, scoped, tag = 'scoped memory for lstm_classifier_forward.1']
    #allocation6 [shape = 'u8[65536]{0}', space=vmem, size = 0x10000, scoped, tag = 'input window, operand 1, single buffered']
    #allocation7 [shape = 's32[1]{0}', space=sflag, size = 0x4, scoped, tag = 'scoped memory for lstm_classifier_forward.1']
    #allocation8 [shape = 'u8[131072]{0}', space=vmem, size = 0x20000, scoped, tag = 'input window, operand 2, single buffered']
    #allocation9 [shape = 'u8[32768]{0}', space=vmem, size = 0x8000, scoped, tag = 'input window, operand 4, single buffered']
    #allocation10 [shape = 's32[1]{0}', space=sflag, size = 0x4, scoped, tag = 'scoped memory for lstm_classifier_forward.1']
    #allocation11 [shape = 'u8[4096]{0}', space=vmem, size = 0x1000, scoped, tag = 'output window, operand 0, single buffered']
    %11 = vsyncpa [#allocation4], 0
    %12 = vsyncpa [#allocation7], 0
    %13 = vsyncpa [#allocation10], 0
    %14 = vsyncpa [#allocation5], 0
    // Predicated region
    $region2: #{lstm_classifier_forward.1} parent=1 // pred_check
      _
    $region3: #{lstm_classifier_forward.1} parent=1 // pred_check_branch
      %16 = sbr.rel (0) target = $region5
    $region4: #{lstm_classifier_forward.1} parent=1 // pred_region
      %s18 = ssub.s32 1024, 1024
      %19 = vsyncadd [#allocation4], %s18
      %s20 = sshll.u32 [#allocation3], 4
      %s21 = int_to_ptr.vmem [resolvable:$true] %s20
      %26 = dma.hbm_to_vmem [thread:$0]  %s0, 1024, %s21, [#allocation4], 128, 128, 8
    $region5: #{lstm_classifier_forward.1} parent=1 // pred_fallthru
      _
    // Predicated region
    $region6: #{lstm_classifier_forward.1} parent=1 // pred_check
      _
    $region7: #{lstm_classifier_forward.1} parent=1 // pred_check_branch
      %28 = sbr.rel (0) target = $region9
    $region8: #{lstm_classifier_forward.1} parent=1 // pred_region
      %s30 = ssub.s32 2048, 2048
      %31 = vsyncadd [#allocation7], %s30
      %s32 = sshll.u32 [#allocation6], 4
      %s33 = int_to_ptr.vmem [resolvable:$true] %s32
      %38 = dma.hbm_to_vmem [thread:$0]  %s1, 2048, %s33, [#allocation7], 512, 512, 32
    $region9: #{lstm_classifier_forward.1} parent=1 // pred_fallthru
      _
    // Predicated region
    $region10: #{lstm_classifier_forward.1} parent=1 // pred_check
      _
    $region11: #{lstm_classifier_forward.1} parent=1 // pred_check_branch
      %40 = sbr.rel (0) target = $region13
    $region12: #{lstm_classifier_forward.1} parent=1 // pred_region
      %s42 = ssub.s32 4096, 4096
      %43 = vsyncadd [#allocation7], %s42
      %s44 = sshll.u32 [#allocation8], 4
      %s45 = int_to_ptr.vmem [resolvable:$true] %s44
      %50 = dma.hbm_to_vmem [thread:$0]  %s2, 4096, %s45, [#allocation7], 256, 256, 16
    $region13: #{lstm_classifier_forward.1} parent=1 // pred_fallthru
      _
    // Predicated region
    $region14: #{lstm_classifier_forward.1} parent=1 // pred_check
      _
    $region15: #{lstm_classifier_forward.1} parent=1 // pred_check_branch
      %52 = sbr.rel (0) target = $region17
    $region16: #{lstm_classifier_forward.1} parent=1 // pred_region
      _
    $region17: #{lstm_classifier_forward.1} parent=1 // pred_fallthru
      _
    // Predicated region
    $region18: #{lstm_classifier_forward.1} parent=1 // pred_check
      _
    $region19: #{lstm_classifier_forward.1} parent=1 // pred_check_branch
      %54 = sbr.rel (0) target = $region21
    $region20: #{lstm_classifier_forward.1} parent=1 // pred_region
      %s56 = ssub.s32 1024, 1024
      %57 = vsyncadd [#allocation10], %s56
      %s58 = sshll.u32 [#allocation9], 4
      %s59 = int_to_ptr.vmem [resolvable:$true] %s58
      %64 = dma.hbm_to_vmem [thread:$0]  %s4, 1024, %s59, [#allocation10], 64, 64, 4
    $region21: #{lstm_classifier_forward.1} parent=1 // pred_fallthru
      _
    // Predicated region
    $region22: #{lstm_classifier_forward.1} parent=1 // pred_check
      _
    $region23: #{lstm_classifier_forward.1} parent=1 // pred_check_branch
      %66 = sbr.rel (0) target = $region25
    $region24: #{lstm_classifier_forward.1} parent=1 // pred_region
      _
    $region25: #{lstm_classifier_forward.1} parent=1 // pred_fallthru
      _
    // Predicated region
    $region26: #{lstm_classifier_forward.1} parent=1 // pred_check
      _
    $region27: #{lstm_classifier_forward.1} parent=1 // pred_check_branch
      %68 = sbr.rel (0) target = $region29
    $region28: #{lstm_classifier_forward.1} parent=1 // pred_region
      %69 = dma.done [#allocation4], 1024
    $region29: #{lstm_classifier_forward.1} parent=1 // pred_fallthru
      _
    // Predicated region
    $region30: #{lstm_classifier_forward.1} parent=1 // pred_check
      _
    $region31: #{lstm_classifier_forward.1} parent=1 // pred_check_branch
      %71 = sbr.rel (0) target = $region33
    $region32: #{lstm_classifier_forward.1} parent=1 // pred_region
      %72 = dma.done [#allocation7], 2048
    $region33: #{lstm_classifier_forward.1} parent=1 // pred_fallthru
      _
    // Predicated region
    $region34: #{lstm_classifier_forward.1} parent=1 // pred_check
      _
    $region35: #{lstm_classifier_forward.1} parent=1 // pred_check_branch
      %74 = sbr.rel (0) target = $region37
    $region36: #{lstm_classifier_forward.1} parent=1 // pred_region
      %75 = dma.done [#allocation7], 4096
    $region37: #{lstm_classifier_forward.1} parent=1 // pred_fallthru
      _
    // Predicated region
    $region38: #{lstm_classifier_forward.1} parent=1 // pred_check
      _
    $region39: #{lstm_classifier_forward.1} parent=1 // pred_check_branch
      %77 = sbr.rel (0) target = $region41
    $region40: #{lstm_classifier_forward.1} parent=1 // pred_region
      %78 = dma.done [#allocation10], 1024
    $region41: #{lstm_classifier_forward.1} parent=1 // pred_fallthru
      _
    %v80 = vld [vmem:[#allocation3] sm:$0xff]
    %v81 = vld [vmem:[#allocation3 + $0x8] sm:$0xff]
    %v82 = vld [vmem:[#allocation3 + $0x10] sm:$0xff]
    %v83 = vld [vmem:[#allocation3 + $0x18] sm:$0xff]
    %v84 = vld [vmem:[#allocation3 + $0x20] sm:$0xff]
    %v85 = vld [vmem:[#allocation3 + $0x28] sm:$0xff]
    %v86 = vld [vmem:[#allocation3 + $0x30] sm:$0xff]
    %v87 = vld [vmem:[#allocation3 + $0x38] sm:$0xff]
    %v88 = vld [vmem:[#allocation6] sm:$0xff]
    %v89 = vld [vmem:[#allocation6 + $0x8] sm:$0xff]
    %v90 = vld [vmem:[#allocation6 + $0x10] sm:$0xff]
    %v91 = vld [vmem:[#allocation6 + $0x18] sm:$0xff]
    %v92 = vld [vmem:[#allocation6 + $0x20] sm:$0xff]
    %v93 = vld [vmem:[#allocation6 + $0x28] sm:$0xff]
    %v94 = vld [vmem:[#allocation6 + $0x30] sm:$0xff]
    %v95 = vld [vmem:[#allocation6 + $0x38] sm:$0xff]
    %v96 = vld [vmem:[#allocation6 + $0x40] sm:$0xff]
    %v97 = vld [vmem:[#allocation6 + $0x48] sm:$0xff]
    %v98 = vld [vmem:[#allocation6 + $0x50] sm:$0xff]
    %v99 = vld [vmem:[#allocation6 + $0x58] sm:$0xff]
    %v100 = vld [vmem:[#allocation6 + $0x60] sm:$0xf]
    %v101 = vld [vmem:[#allocation6 + $0x68] sm:$0xf]
    %v102 = vld [vmem:[#allocation6 + $0x70] sm:$0xf]
    %v103 = vld [vmem:[#allocation6 + $0x78] sm:$0xf]
    %v104 = vld [vmem:[%s3] sm:$0xf]
    %v106 = vlaneseq
    %v107 = vshrl.u32 %v106, 7
    %v108 = vsub.s32 0, %v107
    %v109 = vrot.slane %v104, %v108
    %v110 = vlaneseq
    %v111 = vshrl.u32 %v110, 7
    %v112 = vsub.s32 1, %v111
    %v113 = vrot.slane %v104, %v112
    %v114 = vlaneseq
    %v115 = vshrl.u32 %v114, 7
    %v116 = vsub.s32 2, %v115
    %v117 = vrot.slane %v104, %v116
    %v118 = vlaneseq
    %v119 = vshrl.u32 %v118, 7
    %v120 = vsub.s32 3, %v119
    %v121 = vrot.slane %v104, %v120
    %vm126 = vcmask 228352
    %v128 = vsel %vm126, %v80, 0
    %v131 = vsel %vm126, %v81, 0
    %v134 = vsel %vm126, %v82, 0
    %v137 = vsel %vm126, %v83, 0
    %v140 = vsel %vm126, %v84, 0
    %v143 = vsel %vm126, %v85, 0
    %v146 = vsel %vm126, %v86, 0
    %v149 = vsel %vm126, %v87, 0
    %vm151 = vcmask 1043456
    %v153 = vsel %vm151, %v100, 0
    %v156 = vsel %vm151, %v101, 0
    %v159 = vsel %vm151, %v102, 0
    %v162 = vsel %vm151, %v103, 0
    %164 = vmatprep.subr.mxu0 %v89
    %165 = vmatpush1.msra.mxu0 %v88
    %166 = vmatprep.subr.mxu0 %v93
    %167 = vmatpush1.msra.mxu0 %v92
    %168 = vmatprep.subr.mxu0 %v97
    %169 = vmatpush1.msra.mxu0 %v96
    %170 = vmatprep.subr.mxu0 %v156
    %171 = vmatpush1.msra.mxu0 %v153
    %172 = vmatprep.subr.mxu0 0.0
    %173 = vmatpush1.msra.mxu0 0.0
    %174 = vmatprep.subr.mxu0 0.0
    %175 = vmatpush1.msra.mxu0 0.0
    %176 = vmatprep.subr.mxu0 0.0
    %177 = vmatpush1.msra.mxu0 0.0
    %178 = vmatprep.subr.mxu0 0.0
    %179 = vmatpush1.msra.mxu0 0.0
    %180 = vmatprep.subr.mxu0 0.0
    %181 = vmatpush1.msra.mxu0 0.0
    %182 = vmatprep.subr.mxu0 0.0
    %183 = vmatpush1.msra.mxu0 0.0
    %184 = vmatprep.subr.mxu0 0.0
    %185 = vmatpush1.msra.mxu0 0.0
    %186 = vmatprep.subr.mxu0 0.0
    %187 = vmatpush1.msra.mxu0 0.0
    %188 = vmatprep.subr.mxu0 0.0
    %189 = vmatpush1.msra.mxu0 0.0
    %190 = vmatprep.subr.mxu0 0.0
    %191 = vmatpush1.msra.mxu0 0.0
    %192 = vmatprep.subr.mxu0 0.0
    %193 = vmatpush1.msra.mxu0 0.0
    %194 = vmatprep.subr.mxu0 0.0
    %195 = vmatpush1.msra.mxu0 0.0
    %196 = vmatprep.subr.mxu0 0.0
    %197 = vmatpush1.msra.mxu0 0.0
    %198 = vmatprep.subr.mxu0 0.0
    %199 = vmatpush1.msra.mxu0 0.0
    %200 = vmatprep.subr.mxu0 0.0
    %201 = vmatpush1.msra.mxu0 0.0
    %202 = vmatprep.subr.mxu0 0.0
    %203 = vmatpush1.msra.mxu0 0.0
    %204 = vmatprep.subr.mxu0 0.0
    %205 = vmatpush1.msra.mxu0 0.0
    %206 = vmatprep.subr.mxu0 0.0
    %207 = vmatpush1.msra.mxu0 0.0
    %208 = vmatprep.subr.mxu0 0.0
    %209 = vmatpush1.msra.mxu0 0.0
    %210 = vmatprep.subr.mxu0 0.0
    %211 = vmatpush1.msra.mxu0 0.0
    %212 = vmatprep.subr.mxu0 0.0
    %213 = vmatpush1.msra.mxu0 0.0
    %214 = vmatprep.subr.mxu0 0.0
    %215 = vmatpush1.msra.mxu0 0.0
    %216 = vmatprep.subr.mxu0 0.0
    %217 = vmatpush1.msra.mxu0 0.0
    %218 = vmatprep.subr.mxu0 0.0
    %219 = vmatpush1.msra.mxu0 0.0
    %220 = vmatprep.subr.mxu0 0.0
    %221 = vmatpush1.msra.mxu0 0.0
    %222 = vmatprep.subr.mxu0 0.0
    %223 = vmatpush1.msra.mxu0 0.0
    %224 = vmatprep.subr.mxu0 0.0
    %225 = vmatpush1.msra.mxu0 0.0
    %226 = vmatprep.subr.mxu0 0.0
    %227 = vmatpush1.msra.mxu0 0.0
    %228 = vmatprep.mubr.f32.mxu0 0.0
    %229 = vmatmul.mubr.f32.gmra.mrb[0].mxu0 %v128
    %v230 = vpop.f32.mrb[0].mxu0
    %v231 = vadd.f32 %v109, %v230
    %v232 = vpop.f32.mrb[0].mxu0
    %v233 = vadd.f32 %v113, %v232
    %234 = vmatprep.mubr.f32.mxu0 0.0
    %235 = vmatmul.mubr.f32.gmra.mrb[0].mxu0 %v131
    %v236 = vpop.f32.mrb[0].mxu0
    %v237 = vadd.f32 %v109, %v236
    %v238 = vpop.f32.mrb[0].mxu0
    %v239 = vadd.f32 %v113, %v238
    %240 = vmatprep.mubr.f32.mxu0 0.0
    %241 = vmatmul.mubr.f32.gmra.mrb[0].mxu0 %v134
    %v242 = vpop.f32.mrb[0].mxu0
    %v243 = vadd.f32 %v109, %v242
    %v244 = vpop.f32.mrb[0].mxu0
    %v245 = vadd.f32 %v113, %v244
    %246 = vmatprep.mubr.f32.mxu0 0.0
    %247 = vmatmul.mubr.f32.gmra.mrb[0].mxu0 %v137
    %v248 = vpop.f32.mrb[0].mxu0
    %v249 = vadd.f32 %v109, %v248
    %v250 = vpop.f32.mrb[0].mxu0
    %v251 = vadd.f32 %v113, %v250
    %252 = vmatprep.mubr.f32.mxu0 0.0
    %253 = vmatmul.mubr.f32.gmra.mrb[0].mxu0 %v140
    %v254 = vpop.f32.mrb[0].mxu0
    %v255 = vadd.f32 %v109, %v254
    %v256 = vpop.f32.mrb[0].mxu0
    %v257 = vadd.f32 %v113, %v256
    %258 = vmatprep.mubr.f32.mxu0 0.0
    %259 = vmatmul.mubr.f32.gmra.mrb[0].mxu0 %v143
    %v260 = vpop.f32.mrb[0].mxu0
    %v261 = vadd.f32 %v109, %v260
    %v262 = vpop.f32.mrb[0].mxu0
    %v263 = vadd.f32 %v113, %v262
    %264 = vmatprep.mubr.f32.mxu0 0.0
    %265 = vmatmul.mubr.f32.gmra.mrb[0].mxu0 %v146
    %v266 = vpop.f32.mrb[0].mxu0
    %v267 = vadd.f32 %v109, %v266
    %v268 = vpop.f32.mrb[0].mxu0
    %v269 = vadd.f32 %v113, %v268
    %270 = vmatprep.mubr.f32.mxu0 0.0
    %271 = vmatmul.mubr.f32.gmra.mrb[0].mxu0 %v149
    %v272 = vpop.f32.mrb[0].mxu0
    %v273 = vadd.f32 %v109, %v272
    %v274 = vpop.f32.mrb[0].mxu0
    %v275 = vadd.f32 %v113, %v274
    %276 = vdwg.mxu0
    %277 = vmatprep.subr.mxu0 %v91
    %278 = vmatpush1.msra.mxu0 %v90
    %279 = vmatprep.subr.mxu0 %v95
    %280 = vmatpush1.msra.mxu0 %v94
    %281 = vmatprep.subr.mxu0 %v99
    %282 = vmatpush1.msra.mxu0 %v98
    %283 = vmatprep.subr.mxu0 %v162
    %284 = vmatpush1.msra.mxu0 %v159
    %285 = vmatprep.subr.mxu0 0.0
    %286 = vmatpush1.msra.mxu0 0.0
    %287 = vmatprep.subr.mxu0 0.0
    %288 = vmatpush1.msra.mxu0 0.0
    %289 = vmatprep.subr.mxu0 0.0
    %290 = vmatpush1.msra.mxu0 0.0
    %291 = vmatprep.subr.mxu0 0.0
    %292 = vmatpush1.msra.mxu0 0.0
    %293 = vmatprep.subr.mxu0 0.0
    %294 = vmatpush1.msra.mxu0 0.0
    %295 = vmatprep.subr.mxu0 0.0
    %296 = vmatpush1.msra.mxu0 0.0
    %297 = vmatprep.subr.mxu0 0.0
    %298 = vmatpush1.msra.mxu0 0.0
    %299 = vmatprep.subr.mxu0 0.0
    %300 = vmatpush1.msra.mxu0 0.0
    %301 = vmatprep.subr.mxu0 0.0
    %302 = vmatpush1.msra.mxu0 0.0
    %303 = vmatprep.subr.mxu0 0.0
    %304 = vmatpush1.msra.mxu0 0.0
    %305 = vmatprep.subr.mxu0 0.0
    %306 = vmatpush1.msra.mxu0 0.0
    %307 = vmatprep.subr.mxu0 0.0
    %308 = vmatpush1.msra.mxu0 0.0
    %309 = vmatprep.subr.mxu0 0.0
    %310 = vmatpush1.msra.mxu0 0.0
    %311 = vmatprep.subr.mxu0 0.0
    %312 = vmatpush1.msra.mxu0 0.0
    %313 = vmatprep.subr.mxu0 0.0
    %314 = vmatpush1.msra.mxu0 0.0
    %315 = vmatprep.subr.mxu0 0.0
    %316 = vmatpush1.msra.mxu0 0.0
    %317 = vmatprep.subr.mxu0 0.0
    %318 = vmatpush1.msra.mxu0 0.0
    %319 = vmatprep.subr.mxu0 0.0
    %320 = vmatpush1.msra.mxu0 0.0
    %321 = vmatprep.subr.mxu0 0.0
    %322 = vmatpush1.msra.mxu0 0.0
    %323 = vmatprep.subr.mxu0 0.0
    %324 = vmatpush1.msra.mxu0 0.0
    %325 = vmatprep.subr.mxu0 0.0
    %326 = vmatpush1.msra.mxu0 0.0
    %327 = vmatprep.subr.mxu0 0.0
    %328 = vmatpush1.msra.mxu0 0.0
    %329 = vmatprep.subr.mxu0 0.0
    %330 = vmatpush1.msra.mxu0 0.0
    %331 = vmatprep.subr.mxu0 0.0
    %332 = vmatpush1.msra.mxu0 0.0
    %333 = vmatprep.subr.mxu0 0.0
    %334 = vmatpush1.msra.mxu0 0.0
    %335 = vmatprep.subr.mxu0 0.0
    %336 = vmatpush1.msra.mxu0 0.0
    %337 = vmatprep.subr.mxu0 0.0
    %338 = vmatpush1.msra.mxu0 0.0
    %339 = vmatprep.subr.mxu0 0.0
    %340 = vmatpush1.msra.mxu0 0.0
    %341 = vmatprep.mubr.f32.mxu0 0.0
    %342 = vmatmul.mubr.f32.gmra.mrb[0].mxu0 %v128
    %v343 = vpop.f32.mrb[0].mxu0
    %v344 = vadd.f32 %v117, %v343
    %v345 = vpop.f32.mrb[0].mxu0
    %v346 = vadd.f32 %v121, %v345
    %347 = vmatprep.mubr.f32.mxu0 0.0
    %348 = vmatmul.mubr.f32.gmra.mrb[0].mxu0 %v131
    %v349 = vpop.f32.mrb[0].mxu0
    %v350 = vadd.f32 %v117, %v349
    %v351 = vpop.f32.mrb[0].mxu0
    %v352 = vadd.f32 %v121, %v351
    %353 = vmatprep.mubr.f32.mxu0 0.0
    %354 = vmatmul.mubr.f32.gmra.mrb[0].mxu0 %v134
    %v355 = vpop.f32.mrb[0].mxu0
    %v356 = vadd.f32 %v117, %v355
    %v357 = vpop.f32.mrb[0].mxu0
    %v358 = vadd.f32 %v121, %v357
    %359 = vmatprep.mubr.f32.mxu0 0.0
    %360 = vmatmul.mubr.f32.gmra.mrb[0].mxu0 %v137
    %v361 = vpop.f32.mrb[0].mxu0
    %v362 = vadd.f32 %v117, %v361
    %v363 = vpop.f32.mrb[0].mxu0
    %v364 = vadd.f32 %v121, %v363
    %365 = vmatprep.mubr.f32.mxu0 0.0
    %366 = vmatmul.mubr.f32.gmra.mrb[0].mxu0 %v140
    %v367 = vpop.f32.mrb[0].mxu0
    %v368 = vadd.f32 %v117, %v367
    %v369 = vpop.f32.mrb[0].mxu0
    %v370 = vadd.f32 %v121, %v369
    %371 = vmatprep.mubr.f32.mxu0 0.0
    %372 = vmatmul.mubr.f32.gmra.mrb[0].mxu0 %v143
    %v373 = vpop.f32.mrb[0].mxu0
    %v374 = vadd.f32 %v117, %v373
    %v375 = vpop.f32.mrb[0].mxu0
    %v376 = vadd.f32 %v121, %v375
    %377 = vmatprep.mubr.f32.mxu0 0.0
    %378 = vmatmul.mubr.f32.gmra.mrb[0].mxu0 %v146
    %v379 = vpop.f32.mrb[0].mxu0
    %v380 = vadd.f32 %v117, %v379
    %v381 = vpop.f32.mrb[0].mxu0
    %v382 = vadd.f32 %v121, %v381
    %383 = vmatprep.mubr.f32.mxu0 0.0
    %384 = vmatmul.mubr.f32.gmra.mrb[0].mxu0 %v149
    %v385 = vpop.f32.mrb[0].mxu0
    %v386 = vadd.f32 %v117, %v385
    %v387 = vpop.f32.mrb[0].mxu0
    %v388 = vadd.f32 %v121, %v387
    %389 = vdwg.mxu0
    %390 = vst [vmem:[#allocation2] sm:$0xff] %v231
    %391 = vst [vmem:[#allocation2 + $0x8] sm:$0xff] %v233
    %392 = vst [vmem:[#allocation2 + $0x10] sm:$0xff] %v344
    %393 = vst [vmem:[#allocation2 + $0x18] sm:$0xff] %v346
    %394 = vst [vmem:[#allocation2 + $0x20] sm:$0xff] %v237
    %395 = vst [vmem:[#allocation2 + $0x28] sm:$0xff] %v239
    %396 = vst [vmem:[#allocation2 + $0x30] sm:$0xff] %v350
    %397 = vst [vmem:[#allocation2 + $0x38] sm:$0xff] %v352
    %398 = vst [vmem:[#allocation2 + $0x40] sm:$0xff] %v243
    %399 = vst [vmem:[#allocation2 + $0x48] sm:$0xff] %v245
    %400 = vst [vmem:[#allocation2 + $0x50] sm:$0xff] %v356
    %401 = vst [vmem:[#allocation2 + $0x58] sm:$0xff] %v358
    %402 = vst [vmem:[#allocation2 + $0x60] sm:$0xff] %v249
    %403 = vst [vmem:[#allocation2 + $0x68] sm:$0xff] %v251
    %404 = vst [vmem:[#allocation2 + $0x70] sm:$0xff] %v362
    %405 = vst [vmem:[#allocation2 + $0x78] sm:$0xff] %v364
    %406 = vst [vmem:[#allocation2 + $0x80] sm:$0xff] %v255
    %407 = vst [vmem:[#allocation2 + $0x88] sm:$0xff] %v257
    %408 = vst [vmem:[#allocation2 + $0x90] sm:$0xff] %v368
    %409 = vst [vmem:[#allocation2 + $0x98] sm:$0xff] %v370
    %410 = vst [vmem:[#allocation2 + $0xa0] sm:$0xff] %v261
    %411 = vst [vmem:[#allocation2 + $0xa8] sm:$0xff] %v263
    %412 = vst [vmem:[#allocation2 + $0xb0] sm:$0xff] %v374
    %413 = vst [vmem:[#allocation2 + $0xb8] sm:$0xff] %v376
    %414 = vst [vmem:[#allocation2 + $0xc0] sm:$0xff] %v267
    %415 = vst [vmem:[#allocation2 + $0xc8] sm:$0xff] %v269
    %416 = vst [vmem:[#allocation2 + $0xd0] sm:$0xff] %v380
    %417 = vst [vmem:[#allocation2 + $0xd8] sm:$0xff] %v382
    %418 = vst [vmem:[#allocation2 + $0xe0] sm:$0xff] %v273
    %419 = vst [vmem:[#allocation2 + $0xe8] sm:$0xff] %v275
    %420 = vst [vmem:[#allocation2 + $0xf0] sm:$0xff] %v386
    %421 = vst [vmem:[#allocation2 + $0xf8] sm:$0xff] %v388
    %v422 = vld [vmem:[#allocation8] sm:$0xff]
    %v423 = vld [vmem:[#allocation8 + $0x8] sm:$0xff]
    %v424 = vld [vmem:[#allocation8 + $0x10] sm:$0xff]
    %v425 = vld [vmem:[#allocation8 + $0x18] sm:$0xff]
    %v426 = vld [vmem:[#allocation8 + $0x20] sm:$0xff]
    %v427 = vld [vmem:[#allocation8 + $0x28] sm:$0xff]
    %v428 = vld [vmem:[#allocation8 + $0x30] sm:$0xff]
    %v429 = vld [vmem:[#allocation8 + $0x38] sm:$0xff]
    %v430 = vld [vmem:[#allocation8 + $0x40] sm:$0xff]
    %v431 = vld [vmem:[#allocation8 + $0x48] sm:$0xff]
    %v432 = vld [vmem:[#allocation8 + $0x50] sm:$0xff]
    %v433 = vld [vmem:[#allocation8 + $0x58] sm:$0xff]
    %v434 = vld [vmem:[#allocation8 + $0x60] sm:$0xff]
    %v435 = vld [vmem:[#allocation8 + $0x68] sm:$0xff]
    %v436 = vld [vmem:[#allocation8 + $0x70] sm:$0xff]
    %v437 = vld [vmem:[#allocation8 + $0x78] sm:$0xff]
    %v438 = vld [vmem:[#allocation8 + $0x80] sm:$0xff]
    %v439 = vld [vmem:[#allocation8 + $0x88] sm:$0xff]
    %v440 = vld [vmem:[#allocation8 + $0x90] sm:$0xff]
    %v441 = vld [vmem:[#allocation8 + $0x98] sm:$0xff]
    %v442 = vld [vmem:[#allocation8 + $0xa0] sm:$0xff]
    %v443 = vld [vmem:[#allocation8 + $0xa8] sm:$0xff]
    %v444 = vld [vmem:[#allocation8 + $0xb0] sm:$0xff]
    %v445 = vld [vmem:[#allocation8 + $0xb8] sm:$0xff]
    %v446 = vld [vmem:[#allocation8 + $0xc0] sm:$0xff]
    %v447 = vld [vmem:[#allocation8 + $0xc8] sm:$0xff]
    %v448 = vld [vmem:[#allocation8 + $0xd0] sm:$0xff]
    %v449 = vld [vmem:[#allocation8 + $0xd8] sm:$0xff]
    %v450 = vld [vmem:[#allocation8 + $0xe0] sm:$0xff]
    %v451 = vld [vmem:[#allocation8 + $0xe8] sm:$0xff]
    %v452 = vld [vmem:[#allocation8 + $0xf0] sm:$0xff]
    %v453 = vld [vmem:[#allocation8 + $0xf8] sm:$0xff]
    %v454 = vld [vmem:[#allocation2] sm:$0xff]
    %v455 = vld [vmem:[#allocation2 + $0x8] sm:$0xff]
    %v456 = vld [vmem:[#allocation2 + $0x10] sm:$0xff]
    %v457 = vld [vmem:[#allocation2 + $0x18] sm:$0xff]
    %v490 = vunpack.c.l.b16 %v422
    %v491 = vunpack.c.h.b16 %v422
    %v492 = vunpack.c.l.b16 %v423
    %v493 = vunpack.c.h.b16 %v423
    %v494 = vunpack.c.l.b16 %v424
    %v495 = vunpack.c.h.b16 %v424
    %v496 = vunpack.c.l.b16 %v425
    %v497 = vunpack.c.h.b16 %v425
    %v498 = vunpack.c.l.b16 %v426
    %v499 = vunpack.c.h.b16 %v426
    %v500 = vunpack.c.l.b16 %v427
    %v501 = vunpack.c.h.b16 %v427
    %v502 = vunpack.c.l.b16 %v428
    %v503 = vunpack.c.h.b16 %v428
    %v504 = vunpack.c.l.b16 %v429
    %v505 = vunpack.c.h.b16 %v429
    %v506 = vunpack.c.l.b16 %v430
    %v507 = vunpack.c.h.b16 %v430
    %v508 = vunpack.c.l.b16 %v431
    %v509 = vunpack.c.h.b16 %v431
    %v510 = vunpack.c.l.b16 %v432
    %v511 = vunpack.c.h.b16 %v432
    %v512 = vunpack.c.l.b16 %v433
    %v513 = vunpack.c.h.b16 %v433
    %v514 = vunpack.c.l.b16 %v434
    %v515 = vunpack.c.h.b16 %v434
    %v516 = vunpack.c.l.b16 %v435
    %v517 = vunpack.c.h.b16 %v435
    %v518 = vunpack.c.l.b16 %v436
    %v519 = vunpack.c.h.b16 %v436
    %v520 = vunpack.c.l.b16 %v437
    %v521 = vunpack.c.h.b16 %v437
    %v522 = vunpack.c.l.b16 %v438
    %v523 = vunpack.c.h.b16 %v438
    %v524 = vunpack.c.l.b16 %v439
    %v525 = vunpack.c.h.b16 %v439
    %v526 = vunpack.c.l.b16 %v440
    %v527 = vunpack.c.h.b16 %v440
    %v528 = vunpack.c.l.b16 %v441
    %v529 = vunpack.c.h.b16 %v441
    %v530 = vunpack.c.l.b16 %v442
    %v531 = vunpack.c.h.b16 %v442
    %v532 = vunpack.c.l.b16 %v443
    %v533 = vunpack.c.h.b16 %v443
    %v534 = vunpack.c.l.b16 %v444
    %v535 = vunpack.c.h.b16 %v444
    %v536 = vunpack.c.l.b16 %v445
    %v537 = vunpack.c.h.b16 %v445
    %v538 = vunpack.c.l.b16 %v446
    %v539 = vunpack.c.h.b16 %v446
    %v540 = vunpack.c.l.b16 %v447
    %v541 = vunpack.c.h.b16 %v447
    %v542 = vunpack.c.l.b16 %v448
    %v543 = vunpack.c.h.b16 %v448
    %v544 = vunpack.c.l.b16 %v449
    %v545 = vunpack.c.h.b16 %v449
    %v546 = vunpack.c.l.b16 %v450
    %v547 = vunpack.c.h.b16 %v450
    %v548 = vunpack.c.l.b16 %v451
    %v549 = vunpack.c.h.b16 %v451
    %v550 = vunpack.c.l.b16 %v452
    %v551 = vunpack.c.h.b16 %v452
    %v552 = vunpack.c.l.b16 %v453
    %v553 = vunpack.c.h.b16 %v453
    %v554 = vpack.c.b16 %v494, %v490
    %v555 = vpack.c.b16 %v495, %v491
    %v556 = vpack.c.b16 %v496, %v492
    %v557 = vpack.c.b16 %v497, %v493
    %v558 = vpack.c.b16 %v502, %v498
    %v559 = vpack.c.b16 %v503, %v499
    %v560 = vpack.c.b16 %v504, %v500
    %v561 = vpack.c.b16 %v505, %v501
    %v562 = vpack.c.b16 %v510, %v506
    %v563 = vpack.c.b16 %v511, %v507
    %v564 = vpack.c.b16 %v512, %v508
    %v565 = vpack.c.b16 %v513, %v509
    %v566 = vpack.c.b16 %v518, %v514
    %v567 = vpack.c.b16 %v519, %v515
    %v568 = vpack.c.b16 %v520, %v516
    %v569 = vpack.c.b16 %v521, %v517
    %v570 = vpack.c.b16 %v526, %v522
    %v571 = vpack.c.b16 %v527, %v523
    %v572 = vpack.c.b16 %v528, %v524
    %v573 = vpack.c.b16 %v529, %v525
    %v574 = vpack.c.b16 %v534, %v530
    %v575 = vpack.c.b16 %v535, %v531
    %v576 = vpack.c.b16 %v536, %v532
    %v577 = vpack.c.b16 %v537, %v533
    %v578 = vpack.c.b16 %v542, %v538
    %v579 = vpack.c.b16 %v543, %v539
    %v580 = vpack.c.b16 %v544, %v540
    %v581 = vpack.c.b16 %v545, %v541
    %v582 = vpack.c.b16 %v550, %v546
    %v583 = vpack.c.b16 %v551, %v547
    %v584 = vpack.c.b16 %v552, %v548
    %v585 = vpack.c.b16 %v553, %v549
    %618 = vmatprep.subr.bf16.mxu0 %v555
    %619 = vmatpush1.bf16.msra.mxu0 %v554
    %620 = vmatprep.subr.bf16.mxu0 %v559
    %621 = vmatpush1.bf16.msra.mxu0 %v558
    %622 = vmatprep.subr.bf16.mxu0 %v563
    %623 = vmatpush1.bf16.msra.mxu0 %v562
    %624 = vmatprep.subr.bf16.mxu0 %v567
    %625 = vmatpush1.bf16.msra.mxu0 %v566
    %626 = vmatprep.subr.bf16.mxu0 %v571
    %627 = vmatpush1.bf16.msra.mxu0 %v570
    %628 = vmatprep.subr.bf16.mxu0 %v575
    %629 = vmatpush1.bf16.msra.mxu0 %v574
    %630 = vmatprep.subr.bf16.mxu0 %v579
    %631 = vmatpush1.bf16.msra.mxu0 %v578
    %632 = vmatprep.subr.bf16.mxu0 %v583
    %633 = vmatpush1.bf16.msra.mxu0 %v582
    %634 = vmatprep.subr.bf16.mxu0 0
    %635 = vmatpush1.bf16.msra.mxu0 0
    %636 = vmatprep.subr.bf16.mxu0 0
    %637 = vmatpush1.bf16.msra.mxu0 0
    %638 = vmatprep.subr.bf16.mxu0 0
    %639 = vmatpush1.bf16.msra.mxu0 0
    %640 = vmatprep.subr.bf16.mxu0 0
    %641 = vmatpush1.bf16.msra.mxu0 0
    %642 = vmatprep.subr.bf16.mxu0 0
    %643 = vmatpush1.bf16.msra.mxu0 0
    %644 = vmatprep.subr.bf16.mxu0 0
    %645 = vmatpush1.bf16.msra.mxu0 0
    %646 = vmatprep.subr.bf16.mxu0 0
    %647 = vmatpush1.bf16.msra.mxu0 0
    %648 = vmatprep.subr.bf16.mxu0 0
    %649 = vmatpush1.bf16.msra.mxu0 0
    %650 = vmatprep.mubr.bf16.mxu0 0
    %651 = vmatmul.mubr.bf16.gmra.mrb[0].mxu0 0
    %v652 = vpop.f32.mrb[0].mxu0
    %v653 = vadd.f32 0.0, %v652
    %v654 = vpop.f32.mrb[0].mxu0
    %v655 = vadd.f32 0.0, %v654
    %v656 = vpop.f32.mrb[0].mxu0
    %v657 = vpop.f32.mrb[0].mxu0
    %658 = vdwg.mxu0
    %659 = vmatprep.subr.bf16.mxu0 %v557
    %660 = vmatpush1.bf16.msra.mxu0 %v556
    %661 = vmatprep.subr.bf16.mxu0 %v561
    %662 = vmatpush1.bf16.msra.mxu0 %v560
    %663 = vmatprep.subr.bf16.mxu0 %v565
    %664 = vmatpush1.bf16.msra.mxu0 %v564
    %665 = vmatprep.subr.bf16.mxu0 %v569
    %666 = vmatpush1.bf16.msra.mxu0 %v568
    %667 = vmatprep.subr.bf16.mxu0 %v573
    %668 = vmatpush1.bf16.msra.mxu0 %v572
    %669 = vmatprep.subr.bf16.mxu0 %v577
    %670 = vmatpush1.bf16.msra.mxu0 %v576
    %671 = vmatprep.subr.bf16.mxu0 %v581
    %672 = vmatpush1.bf16.msra.mxu0 %v580
    %673 = vmatprep.subr.bf16.mxu0 %v585
    %674 = vmatpush1.bf16.msra.mxu0 %v584
    %675 = vmatprep.subr.bf16.mxu0 0
    %676 = vmatpush1.bf16.msra.mxu0 0
    %677 = vmatprep.subr.bf16.mxu0 0
    %678 = vmatpush1.bf16.msra.mxu0 0
    %679 = vmatprep.subr.bf16.mxu0 0
    %680 = vmatpush1.bf16.msra.mxu0 0
    %681 = vmatprep.subr.bf16.mxu0 0
    %682 = vmatpush1.bf16.msra.mxu0 0
    %683 = vmatprep.subr.bf16.mxu0 0
    %684 = vmatpush1.bf16.msra.mxu0 0
    %685 = vmatprep.subr.bf16.mxu0 0
    %686 = vmatpush1.bf16.msra.mxu0 0
    %687 = vmatprep.subr.bf16.mxu0 0
    %688 = vmatpush1.bf16.msra.mxu0 0
    %689 = vmatprep.subr.bf16.mxu0 0
    %690 = vmatpush1.bf16.msra.mxu0 0
    %691 = vmatprep.mubr.bf16.mxu0 0
    %692 = vmatmul.mubr.bf16.gmra.mrb[0].mxu0 0
    %v693 = vpop.f32.mrb[0].mxu0
    %v694 = vadd.f32 0.0, %v693
    %v695 = vpop.f32.mrb[0].mxu0
    %v696 = vadd.f32 0.0, %v695
    %v697 = vpop.f32.mrb[0].mxu0
    %v698 = vpop.f32.mrb[0].mxu0
    %699 = vdwg.mxu0
    %v700 = vadd.f32 %v454, %v653
    %v701 = vadd.f32 %v455, %v655
    %v702 = vadd.f32 %v456, %v694
    %v703 = vadd.f32 %v457, %v696
    %v704 = vxor.u32 %v700, 2147483648
    %v705 = vxor.u32 %v701, 2147483648
    %v706 = vxor.u32 %v702, 2147483648
    %v707 = vmul.f32 %v704, 1.442695
    %v708 = vpow.pop %v707
    %v709 = vmul.f32 %v705, 1.442695
    %v710 = vpow.pop %v709
    %v711 = vmul.f32 %v706, 1.442695
    %v712 = vpow.pop %v711
    %v713 = vadd.f32 %v708, 1.0
    %v714 = vadd.f32 %v710, 1.0
    %v715 = vadd.f32 %v712, 1.0
    %v716 = vrcp.pop %v713
    %v717 = vmul.f32 1.0, %v716
    %v718 = vrcp.pop %v714
    %v719 = vmul.f32 1.0, %v718
    %v720 = vrcp.pop %v715
    %v721 = vmul.f32 1.0, %v720
    %v722 = vtanh.pop %v703
    %v723 = vmul.f32 %v719, 0.0
    %v724 = vmul.f32 %v717, %v722
    %v725 = vadd.f32 %v723, %v724
    %v726 = vtanh.pop %v725
    %v727 = vmul.f32 %v721, %v726
    %v728 = vld [vmem:[#allocation2 + $0x20] sm:$0xff]
    %v729 = vld [vmem:[#allocation2 + $0x28] sm:$0xff]
    %v730 = vld [vmem:[#allocation2 + $0x30] sm:$0xff]
    %v731 = vld [vmem:[#allocation2 + $0x38] sm:$0xff]
    %v732 = vpack.c.bf16 %v727, %v727
    %733 = vmatprep.subr.bf16.mxu0 %v555
    %734 = vmatpush1.bf16.msra.mxu0 %v554
    %735 = vmatprep.subr.bf16.mxu0 %v559
    %736 = vmatpush1.bf16.msra.mxu0 %v558
    %737 = vmatprep.subr.bf16.mxu0 %v563
    %738 = vmatpush1.bf16.msra.mxu0 %v562
    %739 = vmatprep.subr.bf16.mxu0 %v567
    %740 = vmatpush1.bf16.msra.mxu0 %v566
    %741 = vmatprep.subr.bf16.mxu0 %v571
    %742 = vmatpush1.bf16.msra.mxu0 %v570
    %743 = vmatprep.subr.bf16.mxu0 %v575
    %744 = vmatpush1.bf16.msra.mxu0 %v574
    %745 = vmatprep.subr.bf16.mxu0 %v579
    %746 = vmatpush1.bf16.msra.mxu0 %v578
    %747 = vmatprep.subr.bf16.mxu0 %v583
    %748 = vmatpush1.bf16.msra.mxu0 %v582
    %749 = vmatprep.subr.bf16.mxu0 0
    %750 = vmatpush1.bf16.msra.mxu0 0
    %751 = vmatprep.subr.bf16.mxu0 0
    %752 = vmatpush1.bf16.msra.mxu0 0
    %753 = vmatprep.subr.bf16.mxu0 0
    %754 = vmatpush1.bf16.msra.mxu0 0
    %755 = vmatprep.subr.bf16.mxu0 0
    %756 = vmatpush1.bf16.msra.mxu0 0
    %757 = vmatprep.subr.bf16.mxu0 0
    %758 = vmatpush1.bf16.msra.mxu0 0
    %759 = vmatprep.subr.bf16.mxu0 0
    %760 = vmatpush1.bf16.msra.mxu0 0
    %761 = vmatprep.subr.bf16.mxu0 0
    %762 = vmatpush1.bf16.msra.mxu0 0
    %763 = vmatprep.subr.bf16.mxu0 0
    %764 = vmatpush1.bf16.msra.mxu0 0
    %765 = vmatprep.mubr.bf16.mxu0 0
    %766 = vmatmul.mubr.bf16.gmra.mrb[0].mxu0 %v732
    %v767 = vpop.f32.mrb[0].mxu0
    %v768 = vadd.f32 0.0, %v767
    %v769 = vpop.f32.mrb[0].mxu0
    %v770 = vadd.f32 0.0, %v769
    %v771 = vpop.f32.mrb[0].mxu0
    %v772 = vpop.f32.mrb[0].mxu0
    %773 = vdwg.mxu0
    %774 = vmatprep.subr.bf16.mxu0 %v557
    %775 = vmatpush1.bf16.msra.mxu0 %v556
    %776 = vmatprep.subr.bf16.mxu0 %v561
    %777 = vmatpush1.bf16.msra.mxu0 %v560
    %778 = vmatprep.subr.bf16.mxu0 %v565
    %779 = vmatpush1.bf16.msra.mxu0 %v564
    %780 = vmatprep.subr.bf16.mxu0 %v569
    %781 = vmatpush1.bf16.msra.mxu0 %v568
    %782 = vmatprep.subr.bf16.mxu0 %v573
    %783 = vmatpush1.bf16.msra.mxu0 %v572
    %784 = vmatprep.subr.bf16.mxu0 %v577
    %785 = vmatpush1.bf16.msra.mxu0 %v576
    %786 = vmatprep.subr.bf16.mxu0 %v581
    %787 = vmatpush1.bf16.msra.mxu0 %v580
    %788 = vmatprep.subr.bf16.mxu0 %v585
    %789 = vmatpush1.bf16.msra.mxu0 %v584
    %790 = vmatprep.subr.bf16.mxu0 0
    %791 = vmatpush1.bf16.msra.mxu0 0
    %792 = vmatprep.subr.bf16.mxu0 0
    %793 = vmatpush1.bf16.msra.mxu0 0
    %794 = vmatprep.subr.bf16.mxu0 0
    %795 = vmatpush1.bf16.msra.mxu0 0
    %796 = vmatprep.subr.bf16.mxu0 0
    %797 = vmatpush1.bf16.msra.mxu0 0
    %798 = vmatprep.subr.bf16.mxu0 0
    %799 = vmatpush1.bf16.msra.mxu0 0
    %800 = vmatprep.subr.bf16.mxu0 0
    %801 = vmatpush1.bf16.msra.mxu0 0
    %802 = vmatprep.subr.bf16.mxu0 0
    %803 = vmatpush1.bf16.msra.mxu0 0
    %804 = vmatprep.subr.bf16.mxu0 0
    %805 = vmatpush1.bf16.msra.mxu0 0
    %806 = vmatprep.mubr.bf16.mxu0 0
    %807 = vmatmul.mubr.bf16.gmra.mrb[0].mxu0 %v732
    %v808 = vpop.f32.mrb[0].mxu0
    %v809 = vadd.f32 0.0, %v808
    %v810 = vpop.f32.mrb[0].mxu0
    %v811 = vadd.f32 0.0, %v810
    %v812 = vpop.f32.mrb[0].mxu0
    %v813 = vpop.f32.mrb[0].mxu0
    %814 = vdwg.mxu0
    %v815 = vadd.f32 %v728, %v768
    %v816 = vadd.f32 %v729, %v770
    %v817 = vadd.f32 %v730, %v809
    %v818 = vadd.f32 %v731, %v811
    %v819 = vxor.u32 %v815, 2147483648
    %v820 = vxor.u32 %v816, 2147483648
    %v821 = vxor.u32 %v817, 2147483648
    %v822 = vmul.f32 %v819, 1.442695
    %v823 = vpow.pop %v822
    %v824 = vmul.f32 %v820, 1.442695
    %v825 = vpow.pop %v824
    %v826 = vmul.f32 %v821, 1.442695
    %v827 = vpow.pop %v826
    %v828 = vadd.f32 %v823, 1.0
    %v829 = vadd.f32 %v825, 1.0
    %v830 = vadd.f32 %v827, 1.0
    %v831 = vrcp.pop %v828
    %v832 = vmul.f32 1.0, %v831
    %v833 = vrcp.pop %v829
    %v834 = vmul.f32 1.0, %v833
    %v835 = vrcp.pop %v830
    %v836 = vmul.f32 1.0, %v835
    %v837 = vtanh.pop %v818
    %v838 = vmul.f32 %v834, %v725
    %v839 = vmul.f32 %v832, %v837
    %v840 = vadd.f32 %v838, %v839
    %v841 = vtanh.pop %v840
    %v842 = vmul.f32 %v836, %v841
    %v843 = vld [vmem:[#allocation2 + $0x40] sm:$0xff]
    %v844 = vld [vmem:[#allocation2 + $0x48] sm:$0xff]
    %v845 = vld [vmem:[#allocation2 + $0x50] sm:$0xff]
    %v846 = vld [vmem:[#allocation2 + $0x58] sm:$0xff]
    %v847 = vpack.c.bf16 %v842, %v842
    %848 = vmatprep.subr.bf16.mxu0 %v555
    %849 = vmatpush1.bf16.msra.mxu0 %v554
    %850 = vmatprep.subr.bf16.mxu0 %v559
    %851 = vmatpush1.bf16.msra.mxu0 %v558
    %852 = vmatprep.subr.bf16.mxu0 %v563
    %853 = vmatpush1.bf16.msra.mxu0 %v562
    %854 = vmatprep.subr.bf16.mxu0 %v567
    %855 = vmatpush1.bf16.msra.mxu0 %v566
    %856 = vmatprep.subr.bf16.mxu0 %v571
    %857 = vmatpush1.bf16.msra.mxu0 %v570
    %858 = vmatprep.subr.bf16.mxu0 %v575
    %859 = vmatpush1.bf16.msra.mxu0 %v574
    %860 = vmatprep.subr.bf16.mxu0 %v579
    %861 = vmatpush1.bf16.msra.mxu0 %v578
    %862 = vmatprep.subr.bf16.mxu0 %v583
    %863 = vmatpush1.bf16.msra.mxu0 %v582
    %864 = vmatprep.subr.bf16.mxu0 0
    %865 = vmatpush1.bf16.msra.mxu0 0
    %866 = vmatprep.subr.bf16.mxu0 0
    %867 = vmatpush1.bf16.msra.mxu0 0
    %868 = vmatprep.subr.bf16.mxu0 0
    %869 = vmatpush1.bf16.msra.mxu0 0
    %870 = vmatprep.subr.bf16.mxu0 0
    %871 = vmatpush1.bf16.msra.mxu0 0
    %872 = vmatprep.subr.bf16.mxu0 0
    %873 = vmatpush1.bf16.msra.mxu0 0
    %874 = vmatprep.subr.bf16.mxu0 0
    %875 = vmatpush1.bf16.msra.mxu0 0
    %876 = vmatprep.subr.bf16.mxu0 0
    %877 = vmatpush1.bf16.msra.mxu0 0
    %878 = vmatprep.subr.bf16.mxu0 0
    %879 = vmatpush1.bf16.msra.mxu0 0
    %880 = vmatprep.mubr.bf16.mxu0 0
    %881 = vmatmul.mubr.bf16.gmra.mrb[0].mxu0 %v847
    %v882 = vpop.f32.mrb[0].mxu0
    %v883 = vadd.f32 0.0, %v882
    %v884 = vpop.f32.mrb[0].mxu0
    %v885 = vadd.f32 0.0, %v884
    %v886 = vpop.f32.mrb[0].mxu0
    %v887 = vpop.f32.mrb[0].mxu0
    %888 = vdwg.mxu0
    %889 = vmatprep.subr.bf16.mxu0 %v557
    %890 = vmatpush1.bf16.msra.mxu0 %v556
    %891 = vmatprep.subr.bf16.mxu0 %v561
    %892 = vmatpush1.bf16.msra.mxu0 %v560
    %893 = vmatprep.subr.bf16.mxu0 %v565
    %894 = vmatpush1.bf16.msra.mxu0 %v564
    %895 = vmatprep.subr.bf16.mxu0 %v569
    %896 = vmatpush1.bf16.msra.mxu0 %v568
    %897 = vmatprep.subr.bf16.mxu0 %v573
    %898 = vmatpush1.bf16.msra.mxu0 %v572
    %899 = vmatprep.subr.bf16.mxu0 %v577
    %900 = vmatpush1.bf16.msra.mxu0 %v576
    %901 = vmatprep.subr.bf16.mxu0 %v581
    %902 = vmatpush1.bf16.msra.mxu0 %v580
    %903 = vmatprep.subr.bf16.mxu0 %v585
    %904 = vmatpush1.bf16.msra.mxu0 %v584
    %905 = vmatprep.subr.bf16.mxu0 0
    %906 = vmatpush1.bf16.msra.mxu0 0
    %907 = vmatprep.subr.bf16.mxu0 0
    %908 = vmatpush1.bf16.msra.mxu0 0
    %909 = vmatprep.subr.bf16.mxu0 0
    %910 = vmatpush1.bf16.msra.mxu0 0
    %911 = vmatprep.subr.bf16.mxu0 0
    %912 = vmatpush1.bf16.msra.mxu0 0
    %913 = vmatprep.subr.bf16.mxu0 0
    %914 = vmatpush1.bf16.msra.mxu0 0
    %915 = vmatprep.subr.bf16.mxu0 0
    %916 = vmatpush1.bf16.msra.mxu0 0
    %917 = vmatprep.subr.bf16.mxu0 0
    %918 = vmatpush1.bf16.msra.mxu0 0
    %919 = vmatprep.subr.bf16.mxu0 0
    %920 = vmatpush1.bf16.msra.mxu0 0
    %921 = vmatprep.mubr.bf16.mxu0 0
    %922 = vmatmul.mubr.bf16.gmra.mrb[0].mxu0 %v847
    %v923 = vpop.f32.mrb[0].mxu0
    %v924 = vadd.f32 0.0, %v923
    %v925 = vpop.f32.mrb[0].mxu0
    %v926 = vadd.f32 0.0, %v925
    %v927 = vpop.f32.mrb[0].mxu0
    %v928 = vpop.f32.mrb[0].mxu0
    %929 = vdwg.mxu0
    %v930 = vadd.f32 %v843, %v883
    %v931 = vadd.f32 %v844, %v885
    %v932 = vadd.f32 %v845, %v924
    %v933 = vadd.f32 %v846, %v926
    %v934 = vxor.u32 %v930, 2147483648
    %v935 = vxor.u32 %v931, 2147483648
    %v936 = vxor.u32 %v932, 2147483648
    %v937 = vmul.f32 %v934, 1.442695
    %v938 = vpow.pop %v937
    %v939 = vmul.f32 %v935, 1.442695
    %v940 = vpow.pop %v939
    %v941 = vmul.f32 %v936, 1.442695
    %v942 = vpow.pop %v941
    %v943 = vadd.f32 %v938, 1.0
    %v944 = vadd.f32 %v940, 1.0
    %v945 = vadd.f32 %v942, 1.0
    %v946 = vrcp.pop %v943
    %v947 = vmul.f32 1.0, %v946
    %v948 = vrcp.pop %v944
    %v949 = vmul.f32 1.0, %v948
    %v950 = vrcp.pop %v945
    %v951 = vmul.f32 1.0, %v950
    %v952 = vtanh.pop %v933
    %v953 = vmul.f32 %v949, %v840
    %v954 = vmul.f32 %v947, %v952
    %v955 = vadd.f32 %v953, %v954
    %v956 = vtanh.pop %v955
    %v957 = vmul.f32 %v951, %v956
    %v958 = vld [vmem:[#allocation2 + $0x60] sm:$0xff]
    %v959 = vld [vmem:[#allocation2 + $0x68] sm:$0xff]
    %v960 = vld [vmem:[#allocation2 + $0x70] sm:$0xff]
    %v961 = vld [vmem:[#allocation2 + $0x78] sm:$0xff]
    %v962 = vpack.c.bf16 %v957, %v957
    %963 = vmatprep.subr.bf16.mxu0 %v555
    %964 = vmatpush1.bf16.msra.mxu0 %v554
    %965 = vmatprep.subr.bf16.mxu0 %v559
    %966 = vmatpush1.bf16.msra.mxu0 %v558
    %967 = vmatprep.subr.bf16.mxu0 %v563
    %968 = vmatpush1.bf16.msra.mxu0 %v562
    %969 = vmatprep.subr.bf16.mxu0 %v567
    %970 = vmatpush1.bf16.msra.mxu0 %v566
    %971 = vmatprep.subr.bf16.mxu0 %v571
    %972 = vmatpush1.bf16.msra.mxu0 %v570
    %973 = vmatprep.subr.bf16.mxu0 %v575
    %974 = vmatpush1.bf16.msra.mxu0 %v574
    %975 = vmatprep.subr.bf16.mxu0 %v579
    %976 = vmatpush1.bf16.msra.mxu0 %v578
    %977 = vmatprep.subr.bf16.mxu0 %v583
    %978 = vmatpush1.bf16.msra.mxu0 %v582
    %979 = vmatprep.subr.bf16.mxu0 0
    %980 = vmatpush1.bf16.msra.mxu0 0
    %981 = vmatprep.subr.bf16.mxu0 0
    %982 = vmatpush1.bf16.msra.mxu0 0
    %983 = vmatprep.subr.bf16.mxu0 0
    %984 = vmatpush1.bf16.msra.mxu0 0
    %985 = vmatprep.subr.bf16.mxu0 0
    %986 = vmatpush1.bf16.msra.mxu0 0
    %987 = vmatprep.subr.bf16.mxu0 0
    %988 = vmatpush1.bf16.msra.mxu0 0
    %989 = vmatprep.subr.bf16.mxu0 0
    %990 = vmatpush1.bf16.msra.mxu0 0
    %991 = vmatprep.subr.bf16.mxu0 0
    %992 = vmatpush1.bf16.msra.mxu0 0
    %993 = vmatprep.subr.bf16.mxu0 0
    %994 = vmatpush1.bf16.msra.mxu0 0
    %995 = vmatprep.mubr.bf16.mxu0 0
    %996 = vmatmul.mubr.bf16.gmra.mrb[0].mxu0 %v962
    %v997 = vpop.f32.mrb[0].mxu0
    %v998 = vadd.f32 0.0, %v997
    %v999 = vpop.f32.mrb[0].mxu0
    %v1000 = vadd.f32 0.0, %v999
    %v1001 = vpop.f32.mrb[0].mxu0
    %v1002 = vpop.f32.mrb[0].mxu0
    %1003 = vdwg.mxu0
    %1004 = vmatprep.subr.bf16.mxu0 %v557
    %1005 = vmatpush1.bf16.msra.mxu0 %v556
    %1006 = vmatprep.subr.bf16.mxu0 %v561
    %1007 = vmatpush1.bf16.msra.mxu0 %v560
    %1008 = vmatprep.subr.bf16.mxu0 %v565
    %1009 = vmatpush1.bf16.msra.mxu0 %v564
    %1010 = vmatprep.subr.bf16.mxu0 %v569
    %1011 = vmatpush1.bf16.msra.mxu0 %v568
    %1012 = vmatprep.subr.bf16.mxu0 %v573
    %1013 = vmatpush1.bf16.msra.mxu0 %v572
    %1014 = vmatprep.subr.bf16.mxu0 %v577
    %1015 = vmatpush1.bf16.msra.mxu0 %v576
    %1016 = vmatprep.subr.bf16.mxu0 %v581
    %1017 = vmatpush1.bf16.msra.mxu0 %v580
    %1018 = vmatprep.subr.bf16.mxu0 %v585
    %1019 = vmatpush1.bf16.msra.mxu0 %v584
    %1020 = vmatprep.subr.bf16.mxu0 0
    %1021 = vmatpush1.bf16.msra.mxu0 0
    %1022 = vmatprep.subr.bf16.mxu0 0
    %1023 = vmatpush1.bf16.msra.mxu0 0
    %1024 = vmatprep.subr.bf16.mxu0 0
    %1025 = vmatpush1.bf16.msra.mxu0 0
    %1026 = vmatprep.subr.bf16.mxu0 0
    %1027 = vmatpush1.bf16.msra.mxu0 0
    %1028 = vmatprep.subr.bf16.mxu0 0
    %1029 = vmatpush1.bf16.msra.mxu0 0
    %1030 = vmatprep.subr.bf16.mxu0 0
    %1031 = vmatpush1.bf16.msra.mxu0 0
    %1032 = vmatprep.subr.bf16.mxu0 0
    %1033 = vmatpush1.bf16.msra.mxu0 0
    %1034 = vmatprep.subr.bf16.mxu0 0
    %1035 = vmatpush1.bf16.msra.mxu0 0
    %1036 = vmatprep.mubr.bf16.mxu0 0
    %1037 = vmatmul.mubr.bf16.gmra.mrb[0].mxu0 %v962
    %v1038 = vpop.f32.mrb[0].mxu0
    %v1039 = vadd.f32 0.0, %v1038
    %v1040 = vpop.f32.mrb[0].mxu0
    %v1041 = vadd.f32 0.0, %v1040
    %v1042 = vpop.f32.mrb[0].mxu0
    %v1043 = vpop.f32.mrb[0].mxu0
    %1044 = vdwg.mxu0
    %v1045 = vadd.f32 %v958, %v998
    %v1046 = vadd.f32 %v959, %v1000
    %v1047 = vadd.f32 %v960, %v1039
    %v1048 = vadd.f32 %v961, %v1041
    %v1049 = vxor.u32 %v1045, 2147483648
    %v1050 = vxor.u32 %v1046, 2147483648
    %v1051 = vxor.u32 %v1047, 2147483648
    %v1052 = vmul.f32 %v1049, 1.442695
    %v1053 = vpow.pop %v1052
    %v1054 = vmul.f32 %v1050, 1.442695
    %v1055 = vpow.pop %v1054
    %v1056 = vmul.f32 %v1051, 1.442695
    %v1057 = vpow.pop %v1056
    %v1058 = vadd.f32 %v1053, 1.0
    %v1059 = vadd.f32 %v1055, 1.0
    %v1060 = vadd.f32 %v1057, 1.0
    %v1061 = vrcp.pop %v1058
    %v1062 = vmul.f32 1.0, %v1061
    %v1063 = vrcp.pop %v1059
    %v1064 = vmul.f32 1.0, %v1063
    %v1065 = vrcp.pop %v1060
    %v1066 = vmul.f32 1.0, %v1065
    %v1067 = vtanh.pop %v1048
    %v1068 = vmul.f32 %v1064, %v955
    %v1069 = vmul.f32 %v1062, %v1067
    %v1070 = vadd.f32 %v1068, %v1069
    %v1071 = vtanh.pop %v1070
    %v1072 = vmul.f32 %v1066, %v1071
    %v1073 = vld [vmem:[#allocation2 + $0x80] sm:$0xff]
    %v1074 = vld [vmem:[#allocation2 + $0x88] sm:$0xff]
    %v1075 = vld [vmem:[#allocation2 + $0x90] sm:$0xff]
    %v1076 = vld [vmem:[#allocation2 + $0x98] sm:$0xff]
    %v1077 = vpack.c.bf16 %v1072, %v1072
    %1078 = vmatprep.subr.bf16.mxu0 %v555
    %1079 = vmatpush1.bf16.msra.mxu0 %v554
    %1080 = vmatprep.subr.bf16.mxu0 %v559
    %1081 = vmatpush1.bf16.msra.mxu0 %v558
    %1082 = vmatprep.subr.bf16.mxu0 %v563
    %1083 = vmatpush1.bf16.msra.mxu0 %v562
    %1084 = vmatprep.subr.bf16.mxu0 %v567
    %1085 = vmatpush1.bf16.msra.mxu0 %v566
    %1086 = vmatprep.subr.bf16.mxu0 %v571
    %1087 = vmatpush1.bf16.msra.mxu0 %v570
    %1088 = vmatprep.subr.bf16.mxu0 %v575
    %1089 = vmatpush1.bf16.msra.mxu0 %v574
    %1090 = vmatprep.subr.bf16.mxu0 %v579
    %1091 = vmatpush1.bf16.msra.mxu0 %v578
    %1092 = vmatprep.subr.bf16.mxu0 %v583
    %1093 = vmatpush1.bf16.msra.mxu0 %v582
    %1094 = vmatprep.subr.bf16.mxu0 0
    %1095 = vmatpush1.bf16.msra.mxu0 0
    %1096 = vmatprep.subr.bf16.mxu0 0
    %1097 = vmatpush1.bf16.msra.mxu0 0
    %1098 = vmatprep.subr.bf16.mxu0 0
    %1099 = vmatpush1.bf16.msra.mxu0 0
    %1100 = vmatprep.subr.bf16.mxu0 0
    %1101 = vmatpush1.bf16.msra.mxu0 0
    %1102 = vmatprep.subr.bf16.mxu0 0
    %1103 = vmatpush1.bf16.msra.mxu0 0
    %1104 = vmatprep.subr.bf16.mxu0 0
    %1105 = vmatpush1.bf16.msra.mxu0 0
    %1106 = vmatprep.subr.bf16.mxu0 0
    %1107 = vmatpush1.bf16.msra.mxu0 0
    %1108 = vmatprep.subr.bf16.mxu0 0
    %1109 = vmatpush1.bf16.msra.mxu0 0
    %1110 = vmatprep.mubr.bf16.mxu0 0
    %1111 = vmatmul.mubr.bf16.gmra.mrb[0].mxu0 %v1077
    %v1112 = vpop.f32.mrb[0].mxu0
    %v1113 = vadd.f32 0.0, %v1112
    %v1114 = vpop.f32.mrb[0].mxu0
    %v1115 = vadd.f32 0.0, %v1114
    %v1116 = vpop.f32.mrb[0].mxu0
    %v1117 = vpop.f32.mrb[0].mxu0
    %1118 = vdwg.mxu0
    %1119 = vmatprep.subr.bf16.mxu0 %v557
    %1120 = vmatpush1.bf16.msra.mxu0 %v556
    %1121 = vmatprep.subr.bf16.mxu0 %v561
    %1122 = vmatpush1.bf16.msra.mxu0 %v560
    %1123 = vmatprep.subr.bf16.mxu0 %v565
    %1124 = vmatpush1.bf16.msra.mxu0 %v564
    %1125 = vmatprep.subr.bf16.mxu0 %v569
    %1126 = vmatpush1.bf16.msra.mxu0 %v568
    %1127 = vmatprep.subr.bf16.mxu0 %v573
    %1128 = vmatpush1.bf16.msra.mxu0 %v572
    %1129 = vmatprep.subr.bf16.mxu0 %v577
    %1130 = vmatpush1.bf16.msra.mxu0 %v576
    %1131 = vmatprep.subr.bf16.mxu0 %v581
    %1132 = vmatpush1.bf16.msra.mxu0 %v580
    %1133 = vmatprep.subr.bf16.mxu0 %v585
    %1134 = vmatpush1.bf16.msra.mxu0 %v584
    %1135 = vmatprep.subr.bf16.mxu0 0
    %1136 = vmatpush1.bf16.msra.mxu0 0
    %1137 = vmatprep.subr.bf16.mxu0 0
    %1138 = vmatpush1.bf16.msra.mxu0 0
    %1139 = vmatprep.subr.bf16.mxu0 0
    %1140 = vmatpush1.bf16.msra.mxu0 0
    %1141 = vmatprep.subr.bf16.mxu0 0
    %1142 = vmatpush1.bf16.msra.mxu0 0
    %1143 = vmatprep.subr.bf16.mxu0 0
    %1144 = vmatpush1.bf16.msra.mxu0 0
    %1145 = vmatprep.subr.bf16.mxu0 0
    %1146 = vmatpush1.bf16.msra.mxu0 0
    %1147 = vmatprep.subr.bf16.mxu0 0
    %1148 = vmatpush1.bf16.msra.mxu0 0
    %1149 = vmatprep.subr.bf16.mxu0 0
    %1150 = vmatpush1.bf16.msra.mxu0 0
    %1151 = vmatprep.mubr.bf16.mxu0 0
    %1152 = vmatmul.mubr.bf16.gmra.mrb[0].mxu0 %v1077
    %v1153 = vpop.f32.mrb[0].mxu0
    %v1154 = vadd.f32 0.0, %v1153
    %v1155 = vpop.f32.mrb[0].mxu0
    %v1156 = vadd.f32 0.0, %v1155
    %v1157 = vpop.f32.mrb[0].mxu0
    %v1158 = vpop.f32.mrb[0].mxu0
    %1159 = vdwg.mxu0
    %v1160 = vadd.f32 %v1073, %v1113
    %v1161 = vadd.f32 %v1074, %v1115
    %v1162 = vadd.f32 %v1075, %v1154
    %v1163 = vadd.f32 %v1076, %v1156
    %v1164 = vxor.u32 %v1160, 2147483648
    %v1165 = vxor.u32 %v1161, 2147483648
    %v1166 = vxor.u32 %v1162, 2147483648
    %v1167 = vmul.f32 %v1164, 1.442695
    %v1168 = vpow.pop %v1167
    %v1169 = vmul.f32 %v1165, 1.442695
    %v1170 = vpow.pop %v1169
    %v1171 = vmul.f32 %v1166, 1.442695
    %v1172 = vpow.pop %v1171
    %v1173 = vadd.f32 %v1168, 1.0
    %v1174 = vadd.f32 %v1170, 1.0
    %v1175 = vadd.f32 %v1172, 1.0
    %v1176 = vrcp.pop %v1173
    %v1177 = vmul.f32 1.0, %v1176
    %v1178 = vrcp.pop %v1174
    %v1179 = vmul.f32 1.0, %v1178
    %v1180 = vrcp.pop %v1175
    %v1181 = vmul.f32 1.0, %v1180
    %v1182 = vtanh.pop %v1163
    %v1183 = vmul.f32 %v1179, %v1070
    %v1184 = vmul.f32 %v1177, %v1182
    %v1185 = vadd.f32 %v1183, %v1184
    %v1186 = vtanh.pop %v1185
    %v1187 = vmul.f32 %v1181, %v1186
    %v1188 = vld [vmem:[#allocation2 + $0xa0] sm:$0xff]
    %v1189 = vld [vmem:[#allocation2 + $0xa8] sm:$0xff]
    %v1190 = vld [vmem:[#allocation2 + $0xb0] sm:$0xff]
    %v1191 = vld [vmem:[#allocation2 + $0xb8] sm:$0xff]
    %v1192 = vpack.c.bf16 %v1187, %v1187
    %1193 = vmatprep.subr.bf16.mxu0 %v555
    %1194 = vmatpush1.bf16.msra.mxu0 %v554
    %1195 = vmatprep.subr.bf16.mxu0 %v559
    %1196 = vmatpush1.bf16.msra.mxu0 %v558
    %1197 = vmatprep.subr.bf16.mxu0 %v563
    %1198 = vmatpush1.bf16.msra.mxu0 %v562
    %1199 = vmatprep.subr.bf16.mxu0 %v567
    %1200 = vmatpush1.bf16.msra.mxu0 %v566
    %1201 = vmatprep.subr.bf16.mxu0 %v571
    %1202 = vmatpush1.bf16.msra.mxu0 %v570
    %1203 = vmatprep.subr.bf16.mxu0 %v575
    %1204 = vmatpush1.bf16.msra.mxu0 %v574
    %1205 = vmatprep.subr.bf16.mxu0 %v579
    %1206 = vmatpush1.bf16.msra.mxu0 %v578
    %1207 = vmatprep.subr.bf16.mxu0 %v583
    %1208 = vmatpush1.bf16.msra.mxu0 %v582
    %1209 = vmatprep.subr.bf16.mxu0 0
    %1210 = vmatpush1.bf16.msra.mxu0 0
    %1211 = vmatprep.subr.bf16.mxu0 0
    %1212 = vmatpush1.bf16.msra.mxu0 0
    %1213 = vmatprep.subr.bf16.mxu0 0
    %1214 = vmatpush1.bf16.msra.mxu0 0
    %1215 = vmatprep.subr.bf16.mxu0 0
    %1216 = vmatpush1.bf16.msra.mxu0 0
    %1217 = vmatprep.subr.bf16.mxu0 0
    %1218 = vmatpush1.bf16.msra.mxu0 0
    %1219 = vmatprep.subr.bf16.mxu0 0
    %1220 = vmatpush1.bf16.msra.mxu0 0
    %1221 = vmatprep.subr.bf16.mxu0 0
    %1222 = vmatpush1.bf16.msra.mxu0 0
    %1223 = vmatprep.subr.bf16.mxu0 0
    %1224 = vmatpush1.bf16.msra.mxu0 0
    %1225 = vmatprep.mubr.bf16.mxu0 0
    %1226 = vmatmul.mubr.bf16.gmra.mrb[0].mxu0 %v1192
    %v1227 = vpop.f32.mrb[0].mxu0
    %v1228 = vadd.f32 0.0, %v1227
    %v1229 = vpop.f32.mrb[0].mxu0
    %v1230 = vadd.f32 0.0, %v1229
    %v1231 = vpop.f32.mrb[0].mxu0
    %v1232 = vpop.f32.mrb[0].mxu0
    %1233 = vdwg.mxu0
    %1234 = vmatprep.subr.bf16.mxu0 %v557
    %1235 = vmatpush1.bf16.msra.mxu0 %v556
    %1236 = vmatprep.subr.bf16.mxu0 %v561
    %1237 = vmatpush1.bf16.msra.mxu0 %v560
    %1238 = vmatprep.subr.bf16.mxu0 %v565
    %1239 = vmatpush1.bf16.msra.mxu0 %v564
    %1240 = vmatprep.subr.bf16.mxu0 %v569
    %1241 = vmatpush1.bf16.msra.mxu0 %v568
    %1242 = vmatprep.subr.bf16.mxu0 %v573
    %1243 = vmatpush1.bf16.msra.mxu0 %v572
    %1244 = vmatprep.subr.bf16.mxu0 %v577
    %1245 = vmatpush1.bf16.msra.mxu0 %v576
    %1246 = vmatprep.subr.bf16.mxu0 %v581
    %1247 = vmatpush1.bf16.msra.mxu0 %v580
    %1248 = vmatprep.subr.bf16.mxu0 %v585
    %1249 = vmatpush1.bf16.msra.mxu0 %v584
    %1250 = vmatprep.subr.bf16.mxu0 0
    %1251 = vmatpush1.bf16.msra.mxu0 0
    %1252 = vmatprep.subr.bf16.mxu0 0
    %1253 = vmatpush1.bf16.msra.mxu0 0
    %1254 = vmatprep.subr.bf16.mxu0 0
    %1255 = vmatpush1.bf16.msra.mxu0 0
    %1256 = vmatprep.subr.bf16.mxu0 0
    %1257 = vmatpush1.bf16.msra.mxu0 0
    %1258 = vmatprep.subr.bf16.mxu0 0
    %1259 = vmatpush1.bf16.msra.mxu0 0
    %1260 = vmatprep.subr.bf16.mxu0 0
    %1261 = vmatpush1.bf16.msra.mxu0 0
    %1262 = vmatprep.subr.bf16.mxu0 0
    %1263 = vmatpush1.bf16.msra.mxu0 0
    %1264 = vmatprep.subr.bf16.mxu0 0
    %1265 = vmatpush1.bf16.msra.mxu0 0
    %1266 = vmatprep.mubr.bf16.mxu0 0
    %1267 = vmatmul.mubr.bf16.gmra.mrb[0].mxu0 %v1192
    %v1268 = vpop.f32.mrb[0].mxu0
    %v1269 = vadd.f32 0.0, %v1268
    %v1270 = vpop.f32.mrb[0].mxu0
    %v1271 = vadd.f32 0.0, %v1270
    %v1272 = vpop.f32.mrb[0].mxu0
    %v1273 = vpop.f32.mrb[0].mxu0
    %1274 = vdwg.mxu0
    %v1275 = vadd.f32 %v1188, %v1228
    %v1276 = vadd.f32 %v1189, %v1230
    %v1277 = vadd.f32 %v1190, %v1269
    %v1278 = vadd.f32 %v1191, %v1271
    %v1279 = vxor.u32 %v1275, 2147483648
    %v1280 = vxor.u32 %v1276, 2147483648
    %v1281 = vxor.u32 %v1277, 2147483648
    %v1282 = vmul.f32 %v1279, 1.442695
    %v1283 = vpow.pop %v1282
    %v1284 = vmul.f32 %v1280, 1.442695
    %v1285 = vpow.pop %v1284
    %v1286 = vmul.f32 %v1281, 1.442695
    %v1287 = vpow.pop %v1286
    %v1288 = vadd.f32 %v1283, 1.0
    %v1289 = vadd.f32 %v1285, 1.0
    %v1290 = vadd.f32 %v1287, 1.0
    %v1291 = vrcp.pop %v1288
    %v1292 = vmul.f32 1.0, %v1291
    %v1293 = vrcp.pop %v1289
    %v1294 = vmul.f32 1.0, %v1293
    %v1295 = vrcp.pop %v1290
    %v1296 = vmul.f32 1.0, %v1295
    %v1297 = vtanh.pop %v1278
    %v1298 = vmul.f32 %v1294, %v1185
    %v1299 = vmul.f32 %v1292, %v1297
    %v1300 = vadd.f32 %v1298, %v1299
    %v1301 = vtanh.pop %v1300
    %v1302 = vmul.f32 %v1296, %v1301
    %v1303 = vld [vmem:[#allocation2 + $0xc0] sm:$0xff]
    %v1304 = vld [vmem:[#allocation2 + $0xc8] sm:$0xff]
    %v1305 = vld [vmem:[#allocation2 + $0xd0] sm:$0xff]
    %v1306 = vld [vmem:[#allocation2 + $0xd8] sm:$0xff]
    %v1307 = vpack.c.bf16 %v1302, %v1302
    %1308 = vmatprep.subr.bf16.mxu0 %v555
    %1309 = vmatpush1.bf16.msra.mxu0 %v554
    %1310 = vmatprep.subr.bf16.mxu0 %v559
    %1311 = vmatpush1.bf16.msra.mxu0 %v558
    %1312 = vmatprep.subr.bf16.mxu0 %v563
    %1313 = vmatpush1.bf16.msra.mxu0 %v562
    %1314 = vmatprep.subr.bf16.mxu0 %v567
    %1315 = vmatpush1.bf16.msra.mxu0 %v566
    %1316 = vmatprep.subr.bf16.mxu0 %v571
    %1317 = vmatpush1.bf16.msra.mxu0 %v570
    %1318 = vmatprep.subr.bf16.mxu0 %v575
    %1319 = vmatpush1.bf16.msra.mxu0 %v574
    %1320 = vmatprep.subr.bf16.mxu0 %v579
    %1321 = vmatpush1.bf16.msra.mxu0 %v578
    %1322 = vmatprep.subr.bf16.mxu0 %v583
    %1323 = vmatpush1.bf16.msra.mxu0 %v582
    %1324 = vmatprep.subr.bf16.mxu0 0
    %1325 = vmatpush1.bf16.msra.mxu0 0
    %1326 = vmatprep.subr.bf16.mxu0 0
    %1327 = vmatpush1.bf16.msra.mxu0 0
    %1328 = vmatprep.subr.bf16.mxu0 0
    %1329 = vmatpush1.bf16.msra.mxu0 0
    %1330 = vmatprep.subr.bf16.mxu0 0
    %1331 = vmatpush1.bf16.msra.mxu0 0
    %1332 = vmatprep.subr.bf16.mxu0 0
    %1333 = vmatpush1.bf16.msra.mxu0 0
    %1334 = vmatprep.subr.bf16.mxu0 0
    %1335 = vmatpush1.bf16.msra.mxu0 0
    %1336 = vmatprep.subr.bf16.mxu0 0
    %1337 = vmatpush1.bf16.msra.mxu0 0
    %1338 = vmatprep.subr.bf16.mxu0 0
    %1339 = vmatpush1.bf16.msra.mxu0 0
    %1340 = vmatprep.mubr.bf16.mxu0 0
    %1341 = vmatmul.mubr.bf16.gmra.mrb[0].mxu0 %v1307
    %v1342 = vpop.f32.mrb[0].mxu0
    %v1343 = vadd.f32 0.0, %v1342
    %v1344 = vpop.f32.mrb[0].mxu0
    %v1345 = vadd.f32 0.0, %v1344
    %v1346 = vpop.f32.mrb[0].mxu0
    %v1347 = vpop.f32.mrb[0].mxu0
    %1348 = vdwg.mxu0
    %1349 = vmatprep.subr.bf16.mxu0 %v557
    %1350 = vmatpush1.bf16.msra.mxu0 %v556
    %1351 = vmatprep.subr.bf16.mxu0 %v561
    %1352 = vmatpush1.bf16.msra.mxu0 %v560
    %1353 = vmatprep.subr.bf16.mxu0 %v565
    %1354 = vmatpush1.bf16.msra.mxu0 %v564
    %1355 = vmatprep.subr.bf16.mxu0 %v569
    %1356 = vmatpush1.bf16.msra.mxu0 %v568
    %1357 = vmatprep.subr.bf16.mxu0 %v573
    %1358 = vmatpush1.bf16.msra.mxu0 %v572
    %1359 = vmatprep.subr.bf16.mxu0 %v577
    %1360 = vmatpush1.bf16.msra.mxu0 %v576
    %1361 = vmatprep.subr.bf16.mxu0 %v581
    %1362 = vmatpush1.bf16.msra.mxu0 %v580
    %1363 = vmatprep.subr.bf16.mxu0 %v585
    %1364 = vmatpush1.bf16.msra.mxu0 %v584
    %1365 = vmatprep.subr.bf16.mxu0 0
    %1366 = vmatpush1.bf16.msra.mxu0 0
    %1367 = vmatprep.subr.bf16.mxu0 0
    %1368 = vmatpush1.bf16.msra.mxu0 0
    %1369 = vmatprep.subr.bf16.mxu0 0
    %1370 = vmatpush1.bf16.msra.mxu0 0
    %1371 = vmatprep.subr.bf16.mxu0 0
    %1372 = vmatpush1.bf16.msra.mxu0 0
    %1373 = vmatprep.subr.bf16.mxu0 0
    %1374 = vmatpush1.bf16.msra.mxu0 0
    %1375 = vmatprep.subr.bf16.mxu0 0
    %1376 = vmatpush1.bf16.msra.mxu0 0
    %1377 = vmatprep.subr.bf16.mxu0 0
    %1378 = vmatpush1.bf16.msra.mxu0 0
    %1379 = vmatprep.subr.bf16.mxu0 0
    %1380 = vmatpush1.bf16.msra.mxu0 0
    %1381 = vmatprep.mubr.bf16.mxu0 0
    %1382 = vmatmul.mubr.bf16.gmra.mrb[0].mxu0 %v1307
    %v1383 = vpop.f32.mrb[0].mxu0
    %v1384 = vadd.f32 0.0, %v1383
    %v1385 = vpop.f32.mrb[0].mxu0
    %v1386 = vadd.f32 0.0, %v1385
    %v1387 = vpop.f32.mrb[0].mxu0
    %v1388 = vpop.f32.mrb[0].mxu0
    %1389 = vdwg.mxu0
    %v1390 = vadd.f32 %v1303, %v1343
    %v1391 = vadd.f32 %v1304, %v1345
    %v1392 = vadd.f32 %v1305, %v1384
    %v1393 = vadd.f32 %v1306, %v1386
    %v1394 = vxor.u32 %v1390, 2147483648
    %v1395 = vxor.u32 %v1391, 2147483648
    %v1396 = vxor.u32 %v1392, 2147483648
    %v1397 = vmul.f32 %v1394, 1.442695
    %v1398 = vpow.pop %v1397
    %v1399 = vmul.f32 %v1395, 1.442695
    %v1400 = vpow.pop %v1399
    %v1401 = vmul.f32 %v1396, 1.442695
    %v1402 = vpow.pop %v1401
    %v1403 = vadd.f32 %v1398, 1.0
    %v1404 = vadd.f32 %v1400, 1.0
    %v1405 = vadd.f32 %v1402, 1.0
    %v1406 = vrcp.pop %v1403
    %v1407 = vmul.f32 1.0, %v1406
    %v1408 = vrcp.pop %v1404
    %v1409 = vmul.f32 1.0, %v1408
    %v1410 = vrcp.pop %v1405
    %v1411 = vmul.f32 1.0, %v1410
    %v1412 = vtanh.pop %v1393
    %v1413 = vmul.f32 %v1409, %v1300
    %v1414 = vmul.f32 %v1407, %v1412
    %v1415 = vadd.f32 %v1413, %v1414
    %v1416 = vtanh.pop %v1415
    %v1417 = vmul.f32 %v1411, %v1416
    %v1418 = vld [vmem:[#allocation2 + $0xe0] sm:$0xff]
    %v1419 = vld [vmem:[#allocation2 + $0xe8] sm:$0xff]
    %v1420 = vld [vmem:[#allocation2 + $0xf0] sm:$0xff]
    %v1421 = vld [vmem:[#allocation2 + $0xf8] sm:$0xff]
    %v1422 = vpack.c.bf16 %v1417, %v1417
    %1423 = vmatprep.subr.bf16.mxu0 %v555
    %1424 = vmatpush1.bf16.msra.mxu0 %v554
    %1425 = vmatprep.subr.bf16.mxu0 %v559
    %1426 = vmatpush1.bf16.msra.mxu0 %v558
    %1427 = vmatprep.subr.bf16.mxu0 %v563
    %1428 = vmatpush1.bf16.msra.mxu0 %v562
    %1429 = vmatprep.subr.bf16.mxu0 %v567
    %1430 = vmatpush1.bf16.msra.mxu0 %v566
    %1431 = vmatprep.subr.bf16.mxu0 %v571
    %1432 = vmatpush1.bf16.msra.mxu0 %v570
    %1433 = vmatprep.subr.bf16.mxu0 %v575
    %1434 = vmatpush1.bf16.msra.mxu0 %v574
    %1435 = vmatprep.subr.bf16.mxu0 %v579
    %1436 = vmatpush1.bf16.msra.mxu0 %v578
    %1437 = vmatprep.subr.bf16.mxu0 %v583
    %1438 = vmatpush1.bf16.msra.mxu0 %v582
    %1439 = vmatprep.subr.bf16.mxu0 0
    %1440 = vmatpush1.bf16.msra.mxu0 0
    %1441 = vmatprep.subr.bf16.mxu0 0
    %1442 = vmatpush1.bf16.msra.mxu0 0
    %1443 = vmatprep.subr.bf16.mxu0 0
    %1444 = vmatpush1.bf16.msra.mxu0 0
    %1445 = vmatprep.subr.bf16.mxu0 0
    %1446 = vmatpush1.bf16.msra.mxu0 0
    %1447 = vmatprep.subr.bf16.mxu0 0
    %1448 = vmatpush1.bf16.msra.mxu0 0
    %1449 = vmatprep.subr.bf16.mxu0 0
    %1450 = vmatpush1.bf16.msra.mxu0 0
    %1451 = vmatprep.subr.bf16.mxu0 0
    %1452 = vmatpush1.bf16.msra.mxu0 0
    %1453 = vmatprep.subr.bf16.mxu0 0
    %1454 = vmatpush1.bf16.msra.mxu0 0
    %1455 = vmatprep.mubr.bf16.mxu0 0
    %1456 = vmatmul.mubr.bf16.gmra.mrb[0].mxu0 %v1422
    %v1457 = vpop.f32.mrb[0].mxu0
    %v1458 = vadd.f32 0.0, %v1457
    %v1459 = vpop.f32.mrb[0].mxu0
    %v1460 = vadd.f32 0.0, %v1459
    %v1461 = vpop.f32.mrb[0].mxu0
    %v1462 = vpop.f32.mrb[0].mxu0
    %1463 = vdwg.mxu0
    %1464 = vmatprep.subr.bf16.mxu0 %v557
    %1465 = vmatpush1.bf16.msra.mxu0 %v556
    %1466 = vmatprep.subr.bf16.mxu0 %v561
    %1467 = vmatpush1.bf16.msra.mxu0 %v560
    %1468 = vmatprep.subr.bf16.mxu0 %v565
    %1469 = vmatpush1.bf16.msra.mxu0 %v564
    %1470 = vmatprep.subr.bf16.mxu0 %v569
    %1471 = vmatpush1.bf16.msra.mxu0 %v568
    %1472 = vmatprep.subr.bf16.mxu0 %v573
    %1473 = vmatpush1.bf16.msra.mxu0 %v572
    %1474 = vmatprep.subr.bf16.mxu0 %v577
    %1475 = vmatpush1.bf16.msra.mxu0 %v576
    %1476 = vmatprep.subr.bf16.mxu0 %v581
    %1477 = vmatpush1.bf16.msra.mxu0 %v580
    %1478 = vmatprep.subr.bf16.mxu0 %v585
    %1479 = vmatpush1.bf16.msra.mxu0 %v584
    %1480 = vmatprep.subr.bf16.mxu0 0
    %1481 = vmatpush1.bf16.msra.mxu0 0
    %1482 = vmatprep.subr.bf16.mxu0 0
    %1483 = vmatpush1.bf16.msra.mxu0 0
    %1484 = vmatprep.subr.bf16.mxu0 0
    %1485 = vmatpush1.bf16.msra.mxu0 0
    %1486 = vmatprep.subr.bf16.mxu0 0
    %1487 = vmatpush1.bf16.msra.mxu0 0
    %1488 = vmatprep.subr.bf16.mxu0 0
    %1489 = vmatpush1.bf16.msra.mxu0 0
    %1490 = vmatprep.subr.bf16.mxu0 0
    %1491 = vmatpush1.bf16.msra.mxu0 0
    %1492 = vmatprep.subr.bf16.mxu0 0
    %1493 = vmatpush1.bf16.msra.mxu0 0
    %1494 = vmatprep.subr.bf16.mxu0 0
    %1495 = vmatpush1.bf16.msra.mxu0 0
    %1496 = vmatprep.mubr.bf16.mxu0 0
    %1497 = vmatmul.mubr.bf16.gmra.mrb[0].mxu0 %v1422
    %v1498 = vpop.f32.mrb[0].mxu0
    %v1499 = vadd.f32 0.0, %v1498
    %v1500 = vpop.f32.mrb[0].mxu0
    %v1501 = vadd.f32 0.0, %v1500
    %v1502 = vpop.f32.mrb[0].mxu0
    %v1503 = vpop.f32.mrb[0].mxu0
    %1504 = vdwg.mxu0
    %v1505 = vadd.f32 %v1418, %v1458
    %v1506 = vadd.f32 %v1419, %v1460
    %v1507 = vadd.f32 %v1420, %v1499
    %v1508 = vadd.f32 %v1421, %v1501
    %v1509 = vxor.u32 %v1505, 2147483648
    %v1510 = vxor.u32 %v1506, 2147483648
    %v1511 = vxor.u32 %v1507, 2147483648
    %v1512 = vmul.f32 %v1509, 1.442695
    %v1513 = vpow.pop %v1512
    %v1514 = vmul.f32 %v1510, 1.442695
    %v1515 = vpow.pop %v1514
    %v1516 = vmul.f32 %v1511, 1.442695
    %v1517 = vpow.pop %v1516
    %v1518 = vadd.f32 %v1513, 1.0
    %v1519 = vadd.f32 %v1515, 1.0
    %v1520 = vadd.f32 %v1517, 1.0
    %v1521 = vrcp.pop %v1518
    %v1522 = vmul.f32 1.0, %v1521
    %v1523 = vrcp.pop %v1519
    %v1524 = vmul.f32 1.0, %v1523
    %v1525 = vrcp.pop %v1520
    %v1526 = vmul.f32 1.0, %v1525
    %v1527 = vtanh.pop %v1508
    %v1528 = vmul.f32 %v1524, %v1415
    %v1529 = vmul.f32 %v1522, %v1527
    %v1530 = vadd.f32 %v1528, %v1529
    %v1531 = vtanh.pop %v1530
    %v1532 = vmul.f32 %v1526, %v1531
    %v1533 = vpack.c.bf16 %v1532, %v1532
    %v1534 = vld [vmem:[#allocation9] sm:$0xf]
    %v1535 = vld [vmem:[#allocation9 + $0x4] sm:$0xf]
    %v1536 = vld [vmem:[#allocation9 + $0x8] sm:$0xf]
    %v1537 = vld [vmem:[#allocation9 + $0xc] sm:$0xf]
    %v1538 = vld [vmem:[#allocation9 + $0x10] sm:$0xf]
    %v1539 = vld [vmem:[#allocation9 + $0x14] sm:$0xf]
    %v1540 = vld [vmem:[#allocation9 + $0x18] sm:$0xf]
    %v1541 = vld [vmem:[#allocation9 + $0x1c] sm:$0xf]
    %v1542 = vld [vmem:[#allocation9 + $0x20] sm:$0xf]
    %v1543 = vld [vmem:[#allocation9 + $0x24] sm:$0xf]
    %v1544 = vld [vmem:[#allocation9 + $0x28] sm:$0xf]
    %v1545 = vld [vmem:[#allocation9 + $0x2c] sm:$0xf]
    %v1546 = vld [vmem:[#allocation9 + $0x30] sm:$0xf]
    %v1547 = vld [vmem:[#allocation9 + $0x34] sm:$0xf]
    %v1548 = vld [vmem:[#allocation9 + $0x38] sm:$0xf]
    %v1549 = vld [vmem:[#allocation9 + $0x3c] sm:$0xf]
    %v1550 = vld [vmem:[%s5] sm:$0x1]
    %v1552 = vlaneseq
    %v1553 = vshrl.u32 %v1552, 7
    %v1554 = vsub.s32 0, %v1553
    %v1555 = vrot.slane %v1550, %v1554
    %v1573 = vunpack.c.l.b16 %v1534
    %v1574 = vunpack.c.l.b16 %v1535
    %v1575 = vunpack.c.l.b16 %v1536
    %v1576 = vunpack.c.l.b16 %v1537
    %v1577 = vunpack.c.l.b16 %v1538
    %v1578 = vunpack.c.l.b16 %v1539
    %v1579 = vunpack.c.l.b16 %v1540
    %v1580 = vunpack.c.l.b16 %v1541
    %v1581 = vunpack.c.l.b16 %v1542
    %v1582 = vunpack.c.l.b16 %v1543
    %v1583 = vunpack.c.l.b16 %v1544
    %v1584 = vunpack.c.l.b16 %v1545
    %v1585 = vunpack.c.l.b16 %v1546
    %v1586 = vunpack.c.l.b16 %v1547
    %v1587 = vunpack.c.l.b16 %v1548
    %v1588 = vunpack.c.l.b16 %v1549
    %v1589 = vpack.c.b16 %v1574, %v1573
    %v1590 = vpack.c.b16 %v1576, %v1575
    %v1591 = vpack.c.b16 %v1578, %v1577
    %v1592 = vpack.c.b16 %v1580, %v1579
    %v1593 = vpack.c.b16 %v1582, %v1581
    %v1594 = vpack.c.b16 %v1584, %v1583
    %v1595 = vpack.c.b16 %v1586, %v1585
    %v1596 = vpack.c.b16 %v1588, %v1587
    %1605 = vmatprep.subr.bf16.mxu0 0
    %1606 = vmatpush1.bf16.msra.mxu0 %v1589
    %1607 = vmatprep.subr.bf16.mxu0 0
    %1608 = vmatpush1.bf16.msra.mxu0 %v1590
    %1609 = vmatprep.subr.bf16.mxu0 0
    %1610 = vmatpush1.bf16.msra.mxu0 %v1591
    %1611 = vmatprep.subr.bf16.mxu0 0
    %1612 = vmatpush1.bf16.msra.mxu0 %v1592
    %1613 = vmatprep.subr.bf16.mxu0 0
    %1614 = vmatpush1.bf16.msra.mxu0 %v1593
    %1615 = vmatprep.subr.bf16.mxu0 0
    %1616 = vmatpush1.bf16.msra.mxu0 %v1594
    %1617 = vmatprep.subr.bf16.mxu0 0
    %1618 = vmatpush1.bf16.msra.mxu0 %v1595
    %1619 = vmatprep.subr.bf16.mxu0 0
    %1620 = vmatpush1.bf16.msra.mxu0 %v1596
    %1621 = vmatprep.subr.bf16.mxu0 0
    %1622 = vmatpush1.bf16.msra.mxu0 0
    %1623 = vmatprep.subr.bf16.mxu0 0
    %1624 = vmatpush1.bf16.msra.mxu0 0
    %1625 = vmatprep.subr.bf16.mxu0 0
    %1626 = vmatpush1.bf16.msra.mxu0 0
    %1627 = vmatprep.subr.bf16.mxu0 0
    %1628 = vmatpush1.bf16.msra.mxu0 0
    %1629 = vmatprep.subr.bf16.mxu0 0
    %1630 = vmatpush1.bf16.msra.mxu0 0
    %1631 = vmatprep.subr.bf16.mxu0 0
    %1632 = vmatpush1.bf16.msra.mxu0 0
    %1633 = vmatprep.subr.bf16.mxu0 0
    %1634 = vmatpush1.bf16.msra.mxu0 0
    %1635 = vmatprep.subr.bf16.mxu0 0
    %1636 = vmatpush1.bf16.msra.mxu0 0
    %1637 = vmatprep.mubr.bf16.mxu0 0
    %1638 = vmatmul.mubr.bf16.gmra.mrb[0].mxu0 %v1533
    %v1639 = vpop.f32.mrb[0].mxu0
    %v1640 = vadd.f32 %v1555, %v1639
    %v1641 = vpop.f32.mrb[0].mxu0
    %v1642 = vpop.f32.mrb[0].mxu0
    %v1643 = vpop.f32.mrb[0].mxu0
    %1644 = vdwg.mxu0
    %1645 = vst [vmem:[#allocation11] sm:$0xff] %v1640
    // Predicated region
    $region42: #{lstm_classifier_forward.1} parent=1 // pred_check
      _
    $region43: #{lstm_classifier_forward.1} parent=1 // pred_check_branch
      %1647 = sbr.rel (0) target = $region45
    $region44: #{lstm_classifier_forward.1} parent=1 // pred_region
      %s1649 = ssub.s32 128, 128
      %1650 = vsyncadd [#allocation5], %s1649
      %s1652 = sshll.u32 [#allocation11], 4
      %s1653 = int_to_ptr.vmem [resolvable:$true] %s1652
      %1655 = dma.vmem_to_hbm [thread:$0]  %s1653, 128, %s6, [#allocation5]
    $region45: #{lstm_classifier_forward.1} parent=1 // pred_fallthru
      _
    // Predicated region
    $region46: #{lstm_classifier_forward.1} parent=1 // pred_check
      _
    $region47: #{lstm_classifier_forward.1} parent=1 // pred_check_branch
      %1657 = sbr.rel (0) target = $region49
    $region48: #{lstm_classifier_forward.1} parent=1 // pred_region
      %1658 = dma.done [#allocation5], 128
    $region49: #{lstm_classifier_forward.1} parent=1 // pred_fallthru
      _
    %1659 = vsyncpa [#allocation4], 1
    %1660 = vsyncpa [#allocation7], 1
    %1661 = vsyncpa [#allocation10], 1
    %1662 = vsyncpa [#allocation5], 1

</llo_original>
